<compile_context>
chip_gen: v7x
topology: tpu7x:2x2x1
jax: 0.10.0
libtpu: 0.0.40
codegen_flags: <defaults>
</compile_context>

<pallas_src>
import math
import functools

import jax
import jax.numpy as jnp
from jax.experimental import pallas as pl
from jax.experimental.pallas import tpu as pltpu

OUT_PAD = 128  # lane-dense padded output width


def transformer_kernel(x_ref, mask_ref, wqkv_ref, bqkv_ref, wo_ref, vec_ref, wlb_ref,
                       out_ref, *, block_B, S, E, h, d_k):
    bB = block_B
    x3 = x_ref[...]                              # (bB, S, E)
    x2 = x3.reshape(bB * S, E)                   # merge leading dims (tile-aligned)
    m3 = mask_ref[...]                           # (bB, S, 1)

    # --- fused QKV projection: one MXU matmul for the whole batch block ---
    qkv = jnp.dot(x2, wqkv_ref[...], preferred_element_type=jnp.float32) + bqkv_ref[...]
    scale = jnp.float32(1.0 / math.sqrt(d_k))
    q = (qkv[:, 0 * E:1 * E] * scale).reshape(bB, S, E)   # fold 1/sqrt(d_k) into q once
    k = qkv[:, 1 * E:2 * E].reshape(bB, S, E)
    v = qkv[:, 2 * E:3 * E].reshape(bB, S, E)

    # --- mask predicate hoisted out of the head loop (query-row masking, as in torch) ---
    qmask = jnp.broadcast_to(m3 == 0.0, (bB, S, S))       # (bB, S, S)
    neg_big = jnp.float32(-1e9)

    # --- multi-head attention, batched over the batch dim; small unrolled head loop ---
    # TODO(synk): for large h/E, replace the head loop with a fully head-batched
    #             (B*h, S, d_k) einsum + key-blocked online softmax before scaling S.
    heads = []
    for i in range(h):
        lo = i * d_k
        qh = q[:, :, lo:lo + d_k]                # (bB, S, d_k)
        kh = k[:, :, lo:lo + d_k]
        vh = v[:, :, lo:lo + d_k]
        s_ = jnp.einsum('bqd,bkd->bqk', qh, kh,
                        preferred_element_type=jnp.float32)              # (bB, S, S)
        s_ = jnp.where(qmask, neg_big, s_)
        s_ = s_ - jnp.max(s_, axis=-1, keepdims=True)
        p = jnp.exp(s_)
        p = p * pl.reciprocal(jnp.sum(p, axis=-1, keepdims=True), approx=True)
        heads.append(jnp.einsum('bqk,bkd->bqd', p, vh,
                                preferred_element_type=jnp.float32))      # (bB, S, d_k)
    attn = jnp.concatenate(heads, axis=-1)       # (bB, S, E)

    # --- output projection (single matmul) + residual + LayerNorm (eps=1e-5, biased var) ---
    vecs = vec_ref[...]                          # (3, E): rows = bo, gamma, beta
    proj = jnp.dot(attn.reshape(bB * S, E), wo_ref[...],
                   preferred_element_type=jnp.float32) + vecs[0:1, :]
    res = proj + x2                              # (bB*S, E)
    mean = jnp.mean(res, axis=-1, keepdims=True)
    var = jnp.mean((res - mean) ** 2, axis=-1, keepdims=True)
    normed = (res - mean) * jax.lax.rsqrt(var + 1e-5)
    normed = normed * vecs[1:2, :] + vecs[2:3, :]

    # --- masked mean pooling over the sequence (per batch row) ---
    normed3 = normed.reshape(bB, S, E)
    pool_sum = jnp.sum(normed3 * m3, axis=1)                               # (bB, E)
    denom = jnp.sum(m3, axis=1) + 1e-5                                     # (bB, 1)
    pooled = pool_sum * pl.reciprocal(denom, approx=True)                  # (bB, E)

    # --- final Linear against lane-dense padded weight (rows 0..E-1 = W, row E = bias) ---
    out = jnp.dot(pooled, wlb_ref[:E, :],
                  preferred_element_type=jnp.float32) + wlb_ref[E:E + 1, :]  # (bB, OUT_PAD)
    out_ref[:, 0, :] = out


def pack_params(raw, E, output_size):
    """raw = (wq,bq,wk,bk,wv,bv,wo,bo,gamma,beta,wl,bl), all (in,out)-layout f32."""
    (wq, bq, wk, bk, wv, bv, wo, bo, gamma, beta, wl, bl) = raw
    wqkv = jnp.concatenate([wq, wk, wv], axis=1)            # (E, 3E)
    bqkv = jnp.concatenate([bq, bk, bv], axis=1)            # (1, 3E)
    vecs = jnp.concatenate([bo, gamma, beta], axis=0)       # (3, E)  rows: bo, gamma, beta
    wl_pad = jnp.zeros((E, OUT_PAD), jnp.float32).at[:, :output_size].set(wl)
    bl_pad = jnp.zeros((1, OUT_PAD), jnp.float32).at[:, :output_size].set(bl)
    wlb = jnp.concatenate([wl_pad, bl_pad], axis=0)         # (E+1, OUT_PAD)
    return (wqkv, bqkv, wo, vecs, wlb)


def model_forward(x, mask3, packed, *, h, output_size, num_batch_blocks=1):
    """x: (B,S,E) = embeddings*sqrt(E) + positional encoding; mask3: (B,S,1) float.

    num_batch_blocks=1 collapses the grid to a single step (best on v5e/v6e, 1 TC);
    set 2 on v7x so both TensorCores get a batch block.
    """
    B, S, E = x.shape
    d_k = E // h
    assert B % num_batch_blocks == 0
    block_B = B // num_batch_blocks
    wqkv, bqkv, wo, vecs, wlb = packed

    def full(a):
        nd = a.ndim
        return pl.BlockSpec(a.shape, lambda i, _nd=nd: (0,) * _nd)

    kernel = functools.partial(transformer_kernel,
                               block_B=block_B, S=S, E=E, h=h, d_k=d_k)
    out = pl.pallas_call(
        kernel,
        out_shape=jax.ShapeDtypeStruct((B, 1, OUT_PAD), jnp.float32),
        grid_spec=pltpu.PrefetchScalarGridSpec(
            num_scalar_prefetch=0,
            grid=(num_batch_blocks,),
            in_specs=[
                pl.BlockSpec((block_B, S, E), lambda i: (i, 0, 0)),   # x
                pl.BlockSpec((block_B, S, 1), lambda i: (i, 0, 0)),   # mask
                full(wqkv), full(bqkv), full(wo), full(vecs), full(wlb),
            ],
            out_specs=pl.BlockSpec((block_B, 1, OUT_PAD), lambda i: (i, 0, 0)),
        ),
        compiler_params=pltpu.CompilerParams(dimension_semantics=("parallel",)),
    )(x, mask3, wqkv, bqkv, wo, vecs, wlb)
    # lane-dense padded output -> slice to real width; squeeze matches torch .squeeze()
    return jnp.squeeze(out[:, 0, :output_size])


def build_positional_encoding(max_len, E):
    position = jnp.arange(0.0, max_len, dtype=jnp.float32)[:, None]
    div_term = jnp.exp(jnp.arange(0.0, E, 2, dtype=jnp.float32)
                       * -(math.log(10000.0) / E))
    ang = position * div_term
    pe = jnp.zeros((max_len, E), jnp.float32)
    pe = pe.at[:, 0::2].set(jnp.sin(ang))
    pe = pe.at[:, 1::2].set(jnp.cos(ang))
    return pe


def reference_forward(x, mask3, raw, *, h, output_size):
    """Pure-JAX mirror of the torch module (eval mode) for a correctness check."""
    (wq, bq, wk, bk, wv, bv, wo, bo, gamma, beta, wl, bl) = raw
    B, S, E = x.shape
    d_k = E // h
    lin = lambda a, w, b: a @ w + b
    q = lin(x, wq, bq).reshape(B, S, h, d_k).transpose(0, 2, 1, 3)
    k = lin(x, wk, bk).reshape(B, S, h, d_k).transpose(0, 2, 1, 3)
    v = lin(x, wv, bv).reshape(B, S, h, d_k).transpose(0, 2, 1, 3)
    scores = jnp.einsum('bhqd,bhkd->bhqk', q, k) / math.sqrt(d_k)
    scores = jnp.where(mask3[:, None, :, :] == 0.0, -1e9, scores)   # (B,1,S,1) row mask
    p = jax.nn.softmax(scores, axis=-1)
    attn = jnp.einsum('bhqk,bhkd->bhqd', p, v).transpose(0, 2, 1, 3).reshape(B, S, E)
    res = lin(attn, wo, bo) + x
    mean = res.mean(-1, keepdims=True)
    var = ((res - mean) ** 2).mean(-1, keepdims=True)
    normed = (res - mean) / jnp.sqrt(var + 1e-5) * gamma + beta
    normed = normed * mask3
    pooled = normed.sum(1) / (mask3.sum(1) + 1e-5)
    return jnp.squeeze(pooled @ wl + bl)


if __name__ == "__main__":
    # small shapes consistent with the module
    vocab_size, E, h, output_size = 50, 32, 4, 4
    B, S = 2, 8
    p_drop = 0.1  # dropout is identity in eval mode  # TODO(synk): training-mode dropout not implemented

    key = jax.random.PRNGKey(0)
    ks = jax.random.split(key, 16)
    u = lambda k, shape: jax.random.uniform(k, shape, jnp.float32, -0.1, 0.1)

    emb_table = jax.random.normal(ks[0], (vocab_size, E), jnp.float32)

    # MHA: 4 x Linear(E, E); weights stored pre-transposed as (in, out)
    wq, bq = u(ks[1], (E, E)), u(ks[2], (1, E))
    wk, bk = u(ks[3], (E, E)), u(ks[4], (1, E))
    wv, bv = u(ks[5], (E, E)), u(ks[6], (1, E))
    wo, bo = u(ks[7], (E, E)), u(ks[8], (1, E))
    # LayerNorm
    gamma = jnp.ones((1, E), jnp.float32)
    beta = jnp.zeros((1, E), jnp.float32)
    # final Linear(E, output_size): uniform(-0.1, 0.1) weight, zero bias (init_weights)
    wl = u(ks[9], (E, output_size))
    bl = jnp.zeros((1, output_size), jnp.float32)
    raw_params = (wq, bq, wk, bk, wv, bv, wo, bo, gamma, beta, wl, bl)
    packed = pack_params(raw_params, E, output_size)

    tokens = jax.random.randint(ks[10], (B, S), 0, vocab_size, jnp.int32)
    mask = (jax.random.uniform(ks[11], (B, S)) > 0.2).astype(jnp.float32)

    # glue: embedding lookup * sqrt(E) + positional encoding
    x = emb_table[tokens] * math.sqrt(E)
    x = x + build_positional_encoding(S, E)[None, :, :]
    mask3 = mask[:, :, None]           # torch: mask.unsqueeze(2)

    # num_batch_blocks=1: single grid step (best for v5e/v6e); use 2 on v7x for dual TCs.
    out = model_forward(x, mask3, packed, h=h, output_size=output_size,
                        num_batch_blocks=1)
    jax.block_until_ready(out)
    assert out.shape == (B, output_size)

    # correctness vs pure-JAX reference (loose tolerance: approx EUP reciprocals in kernel)
    ref = reference_forward(x, mask3, raw_params, h=h, output_size=output_size)
    max_err = float(jnp.max(jnp.abs(out - ref)))
    assert max_err < 1e-2, f"max abs err {max_err}"

    print("KERNEL_OK")
</pallas_src>

<mosaic_0001>
module attributes {stable_mosaic.version = 11 : i64} {
  func.func @transformer_kernel(%arg0: i32, %arg1: memref<2x8x32xf32, #tpu.memory_space<vmem>>, %arg2: memref<2x8x1xf32, #tpu.memory_space<vmem>>, %arg3: memref<32x96xf32, #tpu.memory_space<vmem>>, %arg4: memref<1x96xf32, #tpu.memory_space<vmem>>, %arg5: memref<32x32xf32, #tpu.memory_space<vmem>>, %arg6: memref<3x32xf32, #tpu.memory_space<vmem>>, %arg7: memref<33x128xf32, #tpu.memory_space<vmem>>, %arg8: memref<2x1x128xf32, #tpu.memory_space<vmem>>) attributes {dimension_semantics = [#tpu.dimension_semantics<parallel>], iteration_bounds = array<i64: 1>, scalar_prefetch = 0 : i64, scratch_operands = 0 : i64, tpu.core_type = #tpu.core_type<tc>, window_params = [{transform_indices = @transform_0, window_bounds = array<i64: 2, 8, 32>}, {transform_indices = @transform_1, window_bounds = array<i64: 2, 8, 1>}, {pipeline_mode = #tpu.pipeline_mode<synchronous>, transform_indices = @transform_2, window_bounds = array<i64: 32, 96>}, {pipeline_mode = #tpu.pipeline_mode<synchronous>, transform_indices = @transform_3, window_bounds = array<i64: 1, 96>}, {pipeline_mode = #tpu.pipeline_mode<synchronous>, transform_indices = @transform_4, window_bounds = array<i64: 32, 32>}, {pipeline_mode = #tpu.pipeline_mode<synchronous>, transform_indices = @transform_5, window_bounds = array<i64: 3, 32>}, {pipeline_mode = #tpu.pipeline_mode<synchronous>, transform_indices = @transform_6, window_bounds = array<i64: 33, 128>}, {transform_indices = @transform_7, window_bounds = array<i64: 2, 1, 128>}]} {
    %c0 = arith.constant 0 : index
    %c0_0 = arith.constant 0 : index
    %c0_1 = arith.constant 0 : index
    %0 = vector.load %arg1[%c0, %c0_0, %c0_1] : memref<2x8x32xf32, #tpu.memory_space<vmem>>, vector<2x8x32xf32>
    %1 = vector.shape_cast %0 : vector<2x8x32xf32> to vector<16x32xf32>
    %c0_2 = arith.constant 0 : index
    %c0_3 = arith.constant 0 : index
    %c0_4 = arith.constant 0 : index
    %2 = vector.load %arg2[%c0_2, %c0_3, %c0_4] : memref<2x8x1xf32, #tpu.memory_space<vmem>>, vector<2x8x1xf32>
    %c0_5 = arith.constant 0 : index
    %c0_6 = arith.constant 0 : index
    %3 = vector.load %arg3[%c0_5, %c0_6] : memref<32x96xf32, #tpu.memory_space<vmem>>, vector<32x96xf32>
    %cst = arith.constant dense<0.000000e+00> : vector<16x96xf32>
    %4 = tpu.matmul %1, %3, %cst {dimension_numbers = #tpu.dot_dimension_numbers<[1], [0], [0], [1], [0, 0, 1, 1], [], []>} : vector<16x32xf32>, vector<32x96xf32>, vector<16x96xf32> -> vector<16x96xf32>
    %c0_7 = arith.constant 0 : index
    %c0_8 = arith.constant 0 : index
    %5 = vector.load %arg4[%c0_7, %c0_8] : memref<1x96xf32, #tpu.memory_space<vmem>>, vector<1x96xf32>
    %6 = vector.broadcast %5 : vector<1x96xf32> to vector<16x96xf32>
    %7 = arith.addf %4, %6 : vector<16x96xf32>
    %8 = vector.extract_strided_slice %7 {offsets = [0, 0], sizes = [16, 32], strides = [1, 1]} : vector<16x96xf32> to vector<16x32xf32>
    %cst_9 = arith.constant 0.353553385 : f32
    %9 = vector.broadcast %cst_9 : f32 to vector<16x32xf32>
    %10 = arith.mulf %8, %9 : vector<16x32xf32>
    %11 = vector.shape_cast %10 : vector<16x32xf32> to vector<2x8x32xf32>
    %12 = vector.extract_strided_slice %7 {offsets = [0, 32], sizes = [16, 32], strides = [1, 1]} : vector<16x96xf32> to vector<16x32xf32>
    %13 = vector.shape_cast %12 : vector<16x32xf32> to vector<2x8x32xf32>
    %14 = vector.extract_strided_slice %7 {offsets = [0, 64], sizes = [16, 32], strides = [1, 1]} : vector<16x96xf32> to vector<16x32xf32>
    %15 = vector.shape_cast %14 : vector<16x32xf32> to vector<2x8x32xf32>
    %cst_10 = arith.constant 0.000000e+00 : f32
    %16 = vector.broadcast %cst_10 : f32 to vector<2x8x1xf32>
    %17 = arith.cmpf oeq, %2, %16 : vector<2x8x1xf32>
    %18 = vector.shape_cast %17 : vector<2x8x1xi1> to vector<2x8x1xi1>
    %19 = vector.broadcast %18 : vector<2x8x1xi1> to vector<2x8x8xi1>
    %20 = vector.extract_strided_slice %11 {offsets = [0, 0, 0], sizes = [2, 8, 8], strides = [1, 1, 1]} : vector<2x8x32xf32> to vector<2x8x8xf32>
    %21 = vector.extract_strided_slice %13 {offsets = [0, 0, 0], sizes = [2, 8, 8], strides = [1, 1, 1]} : vector<2x8x32xf32> to vector<2x8x8xf32>
    %22 = vector.extract_strided_slice %15 {offsets = [0, 0, 0], sizes = [2, 8, 8], strides = [1, 1, 1]} : vector<2x8x32xf32> to vector<2x8x8xf32>
    "tpu.trace_start"() <{level = 10 : i32, message = "bqd,bkd->bqk"}> : () -> ()
    %cst_11 = arith.constant dense<0.000000e+00> : vector<2x8x8xf32>
    %23 = tpu.matmul %20, %21, %cst_11 {dimension_numbers = #tpu.dot_dimension_numbers<[2], [2], [1], [1], [0, 0, 0, 1, 1, 1], [0], [0]>} : vector<2x8x8xf32>, vector<2x8x8xf32>, vector<2x8x8xf32> -> vector<2x8x8xf32>
    %cst_12 = arith.constant -1.000000e+09 : f32
    "tpu.trace_stop"() : () -> ()
    %24 = vector.broadcast %cst_12 : f32 to vector<2x8x8xf32>
    %25 = arith.select %19, %24, %23 : vector<2x8x8xi1>, vector<2x8x8xf32>
    %cst_13 = arith.constant dense<0xFF800000> : vector<2x8xf32>
    %26 = vector.multi_reduction <maximumf>, %25, %cst_13 [2] : vector<2x8x8xf32> to vector<2x8xf32>
    %27 = vector.shape_cast %26 : vector<2x8xf32> to vector<2x8x1xf32>
    %28 = vector.broadcast %27 : vector<2x8x1xf32> to vector<2x8x8xf32>
    %29 = arith.subf %25, %28 : vector<2x8x8xf32>
    %30 = math.exp %29 : vector<2x8x8xf32>
    %cst_14 = arith.constant dense<0.000000e+00> : vector<2x8xf32>
    %31 = vector.multi_reduction <add>, %30, %cst_14 [2] : vector<2x8x8xf32> to vector<2x8xf32>
    %32 = vector.shape_cast %31 : vector<2x8xf32> to vector<2x8x1xf32>
    %33 = tpu.reciprocal %32 {approx = true} : vector<2x8x1xf32> -> vector<2x8x1xf32>
    %34 = vector.broadcast %33 : vector<2x8x1xf32> to vector<2x8x8xf32>
    %35 = arith.mulf %30, %34 : vector<2x8x8xf32>
    "tpu.trace_start"() <{level = 10 : i32, message = "bqk,bkd->bqd"}> : () -> ()
    %cst_15 = arith.constant dense<0.000000e+00> : vector<2x8x8xf32>
    %36 = tpu.matmul %35, %22, %cst_15 {dimension_numbers = #tpu.dot_dimension_numbers<[2], [1], [1], [2], [0, 0, 0, 1, 1, 2], [0], [0]>} : vector<2x8x8xf32>, vector<2x8x8xf32>, vector<2x8x8xf32> -> vector<2x8x8xf32>
    "tpu.trace_stop"() : () -> ()
    %37 = vector.extract_strided_slice %11 {offsets = [0, 0, 8], sizes = [2, 8, 8], strides = [1, 1, 1]} : vector<2x8x32xf32> to vector<2x8x8xf32>
    %38 = vector.extract_strided_slice %13 {offsets = [0, 0, 8], sizes = [2, 8, 8], strides = [1, 1, 1]} : vector<2x8x32xf32> to vector<2x8x8xf32>
    %39 = vector.extract_strided_slice %15 {offsets = [0, 0, 8], sizes = [2, 8, 8], strides = [1, 1, 1]} : vector<2x8x32xf32> to vector<2x8x8xf32>
    "tpu.trace_start"() <{level = 10 : i32, message = "bqd,bkd->bqk"}> : () -> ()
    %cst_16 = arith.constant dense<0.000000e+00> : vector<2x8x8xf32>
    %40 = tpu.matmul %37, %38, %cst_16 {dimension_numbers = #tpu.dot_dimension_numbers<[2], [2], [1], [1], [0, 0, 0, 1, 1, 1], [0], [0]>} : vector<2x8x8xf32>, vector<2x8x8xf32>, vector<2x8x8xf32> -> vector<2x8x8xf32>
    %cst_17 = arith.constant -1.000000e+09 : f32
    "tpu.trace_stop"() : () -> ()
    %41 = vector.broadcast %cst_17 : f32 to vector<2x8x8xf32>
    %42 = arith.select %19, %41, %40 : vector<2x8x8xi1>, vector<2x8x8xf32>
    %cst_18 = arith.constant dense<0xFF800000> : vector<2x8xf32>
    %43 = vector.multi_reduction <maximumf>, %42, %cst_18 [2] : vector<2x8x8xf32> to vector<2x8xf32>
    %44 = vector.shape_cast %43 : vector<2x8xf32> to vector<2x8x1xf32>
    %45 = vector.broadcast %44 : vector<2x8x1xf32> to vector<2x8x8xf32>
    %46 = arith.subf %42, %45 : vector<2x8x8xf32>
    %47 = math.exp %46 : vector<2x8x8xf32>
    %cst_19 = arith.constant dense<0.000000e+00> : vector<2x8xf32>
    %48 = vector.multi_reduction <add>, %47, %cst_19 [2] : vector<2x8x8xf32> to vector<2x8xf32>
    %49 = vector.shape_cast %48 : vector<2x8xf32> to vector<2x8x1xf32>
    %50 = tpu.reciprocal %49 {approx = true} : vector<2x8x1xf32> -> vector<2x8x1xf32>
    %51 = vector.broadcast %50 : vector<2x8x1xf32> to vector<2x8x8xf32>
    %52 = arith.mulf %47, %51 : vector<2x8x8xf32>
    "tpu.trace_start"() <{level = 10 : i32, message = "bqk,bkd->bqd"}> : () -> ()
    %cst_20 = arith.constant dense<0.000000e+00> : vector<2x8x8xf32>
    %53 = tpu.matmul %52, %39, %cst_20 {dimension_numbers = #tpu.dot_dimension_numbers<[2], [1], [1], [2], [0, 0, 0, 1, 1, 2], [0], [0]>} : vector<2x8x8xf32>, vector<2x8x8xf32>, vector<2x8x8xf32> -> vector<2x8x8xf32>
    "tpu.trace_stop"() : () -> ()
    %54 = vector.extract_strided_slice %11 {offsets = [0, 0, 16], sizes = [2, 8, 8], strides = [1, 1, 1]} : vector<2x8x32xf32> to vector<2x8x8xf32>
    %55 = vector.extract_strided_slice %13 {offsets = [0, 0, 16], sizes = [2, 8, 8], strides = [1, 1, 1]} : vector<2x8x32xf32> to vector<2x8x8xf32>
    %56 = vector.extract_strided_slice %15 {offsets = [0, 0, 16], sizes = [2, 8, 8], strides = [1, 1, 1]} : vector<2x8x32xf32> to vector<2x8x8xf32>
    "tpu.trace_start"() <{level = 10 : i32, message = "bqd,bkd->bqk"}> : () -> ()
    %cst_21 = arith.constant dense<0.000000e+00> : vector<2x8x8xf32>
    %57 = tpu.matmul %54, %55, %cst_21 {dimension_numbers = #tpu.dot_dimension_numbers<[2], [2], [1], [1], [0, 0, 0, 1, 1, 1], [0], [0]>} : vector<2x8x8xf32>, vector<2x8x8xf32>, vector<2x8x8xf32> -> vector<2x8x8xf32>
    %cst_22 = arith.constant -1.000000e+09 : f32
    "tpu.trace_stop"() : () -> ()
    %58 = vector.broadcast %cst_22 : f32 to vector<2x8x8xf32>
    %59 = arith.select %19, %58, %57 : vector<2x8x8xi1>, vector<2x8x8xf32>
    %cst_23 = arith.constant dense<0xFF800000> : vector<2x8xf32>
    %60 = vector.multi_reduction <maximumf>, %59, %cst_23 [2] : vector<2x8x8xf32> to vector<2x8xf32>
    %61 = vector.shape_cast %60 : vector<2x8xf32> to vector<2x8x1xf32>
    %62 = vector.broadcast %61 : vector<2x8x1xf32> to vector<2x8x8xf32>
    %63 = arith.subf %59, %62 : vector<2x8x8xf32>
    %64 = math.exp %63 : vector<2x8x8xf32>
    %cst_24 = arith.constant dense<0.000000e+00> : vector<2x8xf32>
    %65 = vector.multi_reduction <add>, %64, %cst_24 [2] : vector<2x8x8xf32> to vector<2x8xf32>
    %66 = vector.shape_cast %65 : vector<2x8xf32> to vector<2x8x1xf32>
    %67 = tpu.reciprocal %66 {approx = true} : vector<2x8x1xf32> -> vector<2x8x1xf32>
    %68 = vector.broadcast %67 : vector<2x8x1xf32> to vector<2x8x8xf32>
    %69 = arith.mulf %64, %68 : vector<2x8x8xf32>
    "tpu.trace_start"() <{level = 10 : i32, message = "bqk,bkd->bqd"}> : () -> ()
    %cst_25 = arith.constant dense<0.000000e+00> : vector<2x8x8xf32>
    %70 = tpu.matmul %69, %56, %cst_25 {dimension_numbers = #tpu.dot_dimension_numbers<[2], [1], [1], [2], [0, 0, 0, 1, 1, 2], [0], [0]>} : vector<2x8x8xf32>, vector<2x8x8xf32>, vector<2x8x8xf32> -> vector<2x8x8xf32>
    "tpu.trace_stop"() : () -> ()
    %71 = vector.extract_strided_slice %11 {offsets = [0, 0, 24], sizes = [2, 8, 8], strides = [1, 1, 1]} : vector<2x8x32xf32> to vector<2x8x8xf32>
    %72 = vector.extract_strided_slice %13 {offsets = [0, 0, 24], sizes = [2, 8, 8], strides = [1, 1, 1]} : vector<2x8x32xf32> to vector<2x8x8xf32>
    %73 = vector.extract_strided_slice %15 {offsets = [0, 0, 24], sizes = [2, 8, 8], strides = [1, 1, 1]} : vector<2x8x32xf32> to vector<2x8x8xf32>
    "tpu.trace_start"() <{level = 10 : i32, message = "bqd,bkd->bqk"}> : () -> ()
    %cst_26 = arith.constant dense<0.000000e+00> : vector<2x8x8xf32>
    %74 = tpu.matmul %71, %72, %cst_26 {dimension_numbers = #tpu.dot_dimension_numbers<[2], [2], [1], [1], [0, 0, 0, 1, 1, 1], [0], [0]>} : vector<2x8x8xf32>, vector<2x8x8xf32>, vector<2x8x8xf32> -> vector<2x8x8xf32>
    %cst_27 = arith.constant -1.000000e+09 : f32
    "tpu.trace_stop"() : () -> ()
    %75 = vector.broadcast %cst_27 : f32 to vector<2x8x8xf32>
    %76 = arith.select %19, %75, %74 : vector<2x8x8xi1>, vector<2x8x8xf32>
    %cst_28 = arith.constant dense<0xFF800000> : vector<2x8xf32>
    %77 = vector.multi_reduction <maximumf>, %76, %cst_28 [2] : vector<2x8x8xf32> to vector<2x8xf32>
    %78 = vector.shape_cast %77 : vector<2x8xf32> to vector<2x8x1xf32>
    %79 = vector.broadcast %78 : vector<2x8x1xf32> to vector<2x8x8xf32>
    %80 = arith.subf %76, %79 : vector<2x8x8xf32>
    %81 = math.exp %80 : vector<2x8x8xf32>
    %cst_29 = arith.constant dense<0.000000e+00> : vector<2x8xf32>
    %82 = vector.multi_reduction <add>, %81, %cst_29 [2] : vector<2x8x8xf32> to vector<2x8xf32>
    %83 = vector.shape_cast %82 : vector<2x8xf32> to vector<2x8x1xf32>
    %84 = tpu.reciprocal %83 {approx = true} : vector<2x8x1xf32> -> vector<2x8x1xf32>
    %85 = vector.broadcast %84 : vector<2x8x1xf32> to vector<2x8x8xf32>
    %86 = arith.mulf %81, %85 : vector<2x8x8xf32>
    "tpu.trace_start"() <{level = 10 : i32, message = "bqk,bkd->bqd"}> : () -> ()
    %cst_30 = arith.constant dense<0.000000e+00> : vector<2x8x8xf32>
    %87 = tpu.matmul %86, %73, %cst_30 {dimension_numbers = #tpu.dot_dimension_numbers<[2], [1], [1], [2], [0, 0, 0, 1, 1, 2], [0], [0]>} : vector<2x8x8xf32>, vector<2x8x8xf32>, vector<2x8x8xf32> -> vector<2x8x8xf32>
    "tpu.trace_stop"() : () -> ()
    %88 = tpu.concatenate %36, %53, %70, %87 in 2 : vector<2x8x8xf32>, vector<2x8x8xf32>, vector<2x8x8xf32>, vector<2x8x8xf32> -> vector<2x8x32xf32>
    %c0_31 = arith.constant 0 : index
    %c0_32 = arith.constant 0 : index
    %89 = vector.load %arg6[%c0_31, %c0_32] : memref<3x32xf32, #tpu.memory_space<vmem>>, vector<3x32xf32>
    %90 = vector.shape_cast %88 : vector<2x8x32xf32> to vector<16x32xf32>
    %c0_33 = arith.constant 0 : index
    %c0_34 = arith.constant 0 : index
    %91 = vector.load %arg5[%c0_33, %c0_34] : memref<32x32xf32, #tpu.memory_space<vmem>>, vector<32x32xf32>
    %cst_35 = arith.constant dense<0.000000e+00> : vector<16x32xf32>
    %92 = tpu.matmul %90, %91, %cst_35 {dimension_numbers = #tpu.dot_dimension_numbers<[1], [0], [0], [1], [0, 0, 1, 1], [], []>} : vector<16x32xf32>, vector<32x32xf32>, vector<16x32xf32> -> vector<16x32xf32>
    %93 = vector.extract_strided_slice %89 {offsets = [0, 0], sizes = [1, 32], strides = [1, 1]} : vector<3x32xf32> to vector<1x32xf32>
    %94 = vector.broadcast %93 : vector<1x32xf32> to vector<16x32xf32>
    %95 = arith.addf %92, %94 : vector<16x32xf32>
    %96 = arith.addf %95, %1 : vector<16x32xf32>
    %cst_36 = arith.constant dense<0.000000e+00> : vector<16xf32>
    %97 = vector.multi_reduction <add>, %96, %cst_36 [1] : vector<16x32xf32> to vector<16xf32>
    %98 = vector.shape_cast %97 : vector<16xf32> to vector<16x1xf32>
    %cst_37 = arith.constant 3.200000e+01 : f32
    %99 = vector.broadcast %cst_37 : f32 to vector<16x1xf32>
    %100 = arith.divf %98, %99 : vector<16x1xf32>
    %101 = vector.broadcast %100 : vector<16x1xf32> to vector<16x32xf32>
    %102 = arith.subf %96, %101 : vector<16x32xf32>
    %103 = arith.mulf %102, %102 : vector<16x32xf32>
    %cst_38 = arith.constant dense<0.000000e+00> : vector<16xf32>
    %104 = vector.multi_reduction <add>, %103, %cst_38 [1] : vector<16x32xf32> to vector<16xf32>
    %105 = vector.shape_cast %104 : vector<16xf32> to vector<16x1xf32>
    %cst_39 = arith.constant 3.200000e+01 : f32
    %106 = vector.broadcast %cst_39 : f32 to vector<16x1xf32>
    %107 = arith.divf %105, %106 : vector<16x1xf32>
    %108 = vector.broadcast %100 : vector<16x1xf32> to vector<16x32xf32>
    %109 = arith.subf %96, %108 : vector<16x32xf32>
    %cst_40 = arith.constant 9.99999974E-6 : f32
    %110 = vector.broadcast %cst_40 : f32 to vector<16x1xf32>
    %111 = arith.addf %107, %110 : vector<16x1xf32>
    %112 = math.rsqrt %111 : vector<16x1xf32>
    %113 = vector.broadcast %112 : vector<16x1xf32> to vector<16x32xf32>
    %114 = arith.mulf %109, %113 : vector<16x32xf32>
    %115 = vector.extract_strided_slice %89 {offsets = [1, 0], sizes = [1, 32], strides = [1, 1]} : vector<3x32xf32> to vector<1x32xf32>
    %116 = vector.broadcast %115 : vector<1x32xf32> to vector<16x32xf32>
    %117 = arith.mulf %114, %116 : vector<16x32xf32>
    %118 = vector.extract_strided_slice %89 {offsets = [2, 0], sizes = [1, 32], strides = [1, 1]} : vector<3x32xf32> to vector<1x32xf32>
    %119 = vector.broadcast %118 : vector<1x32xf32> to vector<16x32xf32>
    %120 = arith.addf %117, %119 : vector<16x32xf32>
    %121 = vector.shape_cast %120 : vector<16x32xf32> to vector<2x8x32xf32>
    %122 = vector.broadcast %2 : vector<2x8x1xf32> to vector<2x8x32xf32>
    %123 = arith.mulf %121, %122 : vector<2x8x32xf32>
    %cst_41 = arith.constant dense<0.000000e+00> : vector<2x32xf32>
    %124 = vector.multi_reduction <add>, %123, %cst_41 [1] : vector<2x8x32xf32> to vector<2x32xf32>
    %cst_42 = arith.constant dense<0.000000e+00> : vector<2x1xf32>
    %125 = vector.multi_reduction <add>, %2, %cst_42 [1] : vector<2x8x1xf32> to vector<2x1xf32>
    %cst_43 = arith.constant 9.99999974E-6 : f32
    %126 = vector.broadcast %cst_43 : f32 to vector<2x1xf32>
    %127 = arith.addf %125, %126 : vector<2x1xf32>
    %128 = tpu.reciprocal %127 {approx = true} : vector<2x1xf32> -> vector<2x1xf32>
    %129 = vector.broadcast %128 : vector<2x1xf32> to vector<2x32xf32>
    %130 = arith.mulf %124, %129 : vector<2x32xf32>
    %c0_44 = arith.constant 0 : index
    %c0_45 = arith.constant 0 : index
    %131 = vector.load %arg7[%c0_44, %c0_45] : memref<33x128xf32, #tpu.memory_space<vmem>>, vector<32x128xf32>
    %cst_46 = arith.constant dense<0.000000e+00> : vector<2x128xf32>
    %132 = tpu.matmul %130, %131, %cst_46 {dimension_numbers = #tpu.dot_dimension_numbers<[1], [0], [0], [1], [0, 0, 1, 1], [], []>} : vector<2x32xf32>, vector<32x128xf32>, vector<2x128xf32> -> vector<2x128xf32>
    %c32 = arith.constant 32 : index
    %c0_47 = arith.constant 0 : index
    %133 = vector.load %arg7[%c32, %c0_47] : memref<33x128xf32, #tpu.memory_space<vmem>>, vector<1x128xf32>
    %134 = vector.broadcast %133 : vector<1x128xf32> to vector<2x128xf32>
    %135 = arith.addf %132, %134 : vector<2x128xf32>
    %c0_48 = arith.constant 0 : index
    %c0_49 = arith.constant 0 : index
    %c0_50 = arith.constant 0 : index
    %136 = vector.load %arg8[%c0_48, %c0_49, %c0_50] : memref<2x1x128xf32, #tpu.memory_space<vmem>>, vector<2x1x128xf32>
    %137 = vector.shape_cast %136 : vector<2x1x128xf32> to vector<2x128xf32>
    %138 = vector.shape_cast %135 : vector<2x128xf32> to vector<2x1x128xf32>
    tpu.vector_store %arg8[%c0_48, %c0_49, %c0_50], %138 {strides = array<i32>} : memref<2x1x128xf32, #tpu.memory_space<vmem>>, vector<2x1x128xf32>,
    return
  }
  func.func @transform_0(%arg0: i32) -> (i32, i32, i32) {
    %c0_i32 = arith.constant 0 : i32
    %c0_i32_0 = arith.constant 0 : i32
    %c0_i32_1 = arith.constant 0 : i32
    return %arg0, %c0_i32, %c0_i32_0 : i32, i32, i32
  }
  func.func @transform_1(%arg0: i32) -> (i32, i32, i32) {
    %c0_i32 = arith.constant 0 : i32
    %c0_i32_0 = arith.constant 0 : i32
    %c0_i32_1 = arith.constant 0 : i32
    return %arg0, %c0_i32, %c0_i32_0 : i32, i32, i32
  }
  func.func @transform_2(%arg0: i32) -> (i32, i32) {
    %c0_i32 = arith.constant 0 : i32
    %c0_i32_0 = arith.constant 0 : i32
    %c0_i32_1 = arith.constant 0 : i32
    return %c0_i32, %c0_i32_0 : i32, i32
  }
  func.func @transform_3(%arg0: i32) -> (i32, i32) {
    %c0_i32 = arith.constant 0 : i32
    %c0_i32_0 = arith.constant 0 : i32
    %c0_i32_1 = arith.constant 0 : i32
    return %c0_i32, %c0_i32_0 : i32, i32
  }
  func.func @transform_4(%arg0: i32) -> (i32, i32) {
    %c0_i32 = arith.constant 0 : i32
    %c0_i32_0 = arith.constant 0 : i32
    %c0_i32_1 = arith.constant 0 : i32
    return %c0_i32, %c0_i32_0 : i32, i32
  }
  func.func @transform_5(%arg0: i32) -> (i32, i32) {
    %c0_i32 = arith.constant 0 : i32
    %c0_i32_0 = arith.constant 0 : i32
    %c0_i32_1 = arith.constant 0 : i32
    return %c0_i32, %c0_i32_0 : i32, i32
  }
  func.func @transform_6(%arg0: i32) -> (i32, i32) {
    %c0_i32 = arith.constant 0 : i32
    %c0_i32_0 = arith.constant 0 : i32
    %c0_i32_1 = arith.constant 0 : i32
    return %c0_i32, %c0_i32_0 : i32, i32
  }
  func.func @transform_7(%arg0: i32) -> (i32, i32, i32) {
    %c0_i32 = arith.constant 0 : i32
    %c0_i32_0 = arith.constant 0 : i32
    %c0_i32_1 = arith.constant 0 : i32
    return %arg0, %c0_i32, %c0_i32_0 : i32, i32, i32
  }
}

</mosaic_0001>

<llo_original>
// kernel: tpu_custom_call.1
$region0: #{tpu_custom_call.1}
  #allocation0 [shape = 'u32[]', space=smem, size = 0x4, offset = 0x4, fixed_abs, tag = 'smem constant byte address 0x4 - core index']
  #allocation1 [shape = 'u32[144,128]{1,0:T(1,128)}', space=vmem, size = 0x12000, scoped, tag = 'internal scratch']
  %s0 = inlined_call_operand.hbm [shape: f32[2,8,32], index: 0, kind: input, shape index: {}]
  %s1 = inlined_call_operand.vmem [shape: f32[2,8,1], index: 1, kind: input, shape index: {}]
  %s2 = inlined_call_operand.hbm [shape: f32[32,96], index: 2, kind: input, shape index: {}]
  %s3 = inlined_call_operand.hbm [shape: f32[1,96], index: 3, kind: input, shape index: {}]
  %s4 = inlined_call_operand.hbm [shape: f32[32,32], index: 4, kind: input, shape index: {}]
  %s5 = inlined_call_operand.hbm [shape: f32[3,32], index: 5, kind: input, shape index: {}]
  %s6 = inlined_call_operand.vmem [shape: f32[33,128], index: 6, kind: input, shape index: {}]
  %s7 = inlined_call_operand.hbm [shape: f32[2,1,128], index: 7, kind: output, shape index: {}]
  %s8 = sld [smem:[#allocation0]]
  $region58: #{tpu_custom_call.1} parent=0
    _
  %s10 = ssub.s32 1, %s8
  %s11 = scalar_select 0, %s10, %s8
  $region1: #{tpu_custom_call.1} parent=0
    #allocation2 [shape = 'u8[8192]{0}', space=vmem, size = 0x2000, scoped, tag = 'input window, operand 0, single buffered']
    #allocation3 [shape = 's32[1]{0}', space=sflag, size = 0x4, scoped, tag = 'scoped memory for tpu_custom_call.1']
    #allocation4 [shape = 's32[1]{0}', space=sflag, size = 0x4, scoped, tag = 'scoped memory for tpu_custom_call.1']
    #allocation5 [shape = 'u8[16384]{0}', space=vmem, size = 0x4000, scoped, tag = 'input window, operand 2, single buffered']
    #allocation6 [shape = 's32[1]{0}', space=sflag, size = 0x4, scoped, tag = 'scoped memory for tpu_custom_call.1']
    #allocation7 [shape = 'u8[512]{0}', space=vmem, size = 0x400, scoped, tag = 'input window, operand 3, single buffered']
    #allocation8 [shape = 'u8[16384]{0}', space=vmem, size = 0x4000, scoped, tag = 'input window, operand 4, single buffered']
    #allocation9 [shape = 's32[1]{0}', space=sflag, size = 0x4, scoped, tag = 'scoped memory for tpu_custom_call.1']
    #allocation10 [shape = 'u8[2048]{0}', space=vmem, size = 0x800, scoped, tag = 'input window, operand 5, single buffered']
    #allocation11 [shape = 'u8[1024]{0}', space=vmem, size = 0x400, scoped, tag = 'output window, operand 0, single buffered']
    %12 = vsyncpa [#allocation3], 0
    %13 = vsyncpa [#allocation6], 0
    %14 = vsyncpa [#allocation9], 0
    %15 = vsyncpa [#allocation4], 0
    // Predicated region
    $region2: #{tpu_custom_call.1} parent=1 // pred_check
      _
    $region3: #{tpu_custom_call.1} parent=1 // pred_check_branch
      %17 = sbr.rel (0) target = $region5
    $region4: #{tpu_custom_call.1} parent=1 // pred_region
      %s19 = ssub.s32 256, 256
      %20 = vsyncadd [#allocation3], %s19
      %s21 = sshll.u32 [#allocation2], 4
      %s22 = int_to_ptr.vmem [resolvable:$true] %s21
      %27 = dma.hbm_to_vmem [thread:$0]  %s0, 256, %s22, [#allocation3], 128, 128, 8
    $region5: #{tpu_custom_call.1} parent=1 // pred_fallthru
      _
    // Predicated region
    $region6: #{tpu_custom_call.1} parent=1 // pred_check
      _
    $region7: #{tpu_custom_call.1} parent=1 // pred_check_branch
      %29 = sbr.rel (0) target = $region9
    $region8: #{tpu_custom_call.1} parent=1 // pred_region
      _
    $region9: #{tpu_custom_call.1} parent=1 // pred_fallthru
      _
    // Predicated region
    $region10: #{tpu_custom_call.1} parent=1 // pred_check
      _
    $region11: #{tpu_custom_call.1} parent=1 // pred_check_branch
      %31 = sbr.rel (0) target = $region13
    $region12: #{tpu_custom_call.1} parent=1 // pred_region
      %s33 = ssub.s32 512, 512
      %34 = vsyncadd [#allocation6], %s33
      %s35 = sshll.u32 [#allocation5], 4
      %s36 = int_to_ptr.vmem [resolvable:$true] %s35
      %41 = dma.hbm_to_vmem [thread:$0]  %s2, 512, %s36, [#allocation6], 128, 128, 8
    $region13: #{tpu_custom_call.1} parent=1 // pred_fallthru
      _
    // Predicated region
    $region14: #{tpu_custom_call.1} parent=1 // pred_check
      _
    $region15: #{tpu_custom_call.1} parent=1 // pred_check_branch
      %43 = sbr.rel (0) target = $region17
    $region16: #{tpu_custom_call.1} parent=1 // pred_region
      %s45 = ssub.s32 16, 16
      %46 = vsyncadd [#allocation6], %s45
      %s48 = sshll.u32 [#allocation7], 4
      %s49 = int_to_ptr.vmem [resolvable:$true] %s48
      %51 = dma.hbm_to_vmem [thread:$0]  %s3, 16, %s49, [#allocation6]
    $region17: #{tpu_custom_call.1} parent=1 // pred_fallthru
      _
    // Predicated region
    $region18: #{tpu_custom_call.1} parent=1 // pred_check
      _
    $region19: #{tpu_custom_call.1} parent=1 // pred_check_branch
      %53 = sbr.rel (0) target = $region21
    $region20: #{tpu_custom_call.1} parent=1 // pred_region
      %s55 = ssub.s32 512, 512
      %56 = vsyncadd [#allocation9], %s55
      %s57 = sshll.u32 [#allocation8], 4
      %s58 = int_to_ptr.vmem [resolvable:$true] %s57
      %63 = dma.hbm_to_vmem [thread:$0]  %s4, 512, %s58, [#allocation9], 128, 128, 8
    $region21: #{tpu_custom_call.1} parent=1 // pred_fallthru
      _
    // Predicated region
    $region22: #{tpu_custom_call.1} parent=1 // pred_check
      _
    $region23: #{tpu_custom_call.1} parent=1 // pred_check_branch
      %65 = sbr.rel (0) target = $region25
    $region24: #{tpu_custom_call.1} parent=1 // pred_region
      %s67 = ssub.s32 64, 64
      %68 = vsyncadd [#allocation9], %s67
      %s70 = sshll.u32 [#allocation10], 4
      %s71 = int_to_ptr.vmem [resolvable:$true] %s70
      %73 = dma.hbm_to_vmem [thread:$0]  %s5, 64, %s71, [#allocation9]
    $region25: #{tpu_custom_call.1} parent=1 // pred_fallthru
      _
    // Predicated region
    $region26: #{tpu_custom_call.1} parent=1 // pred_check
      _
    $region27: #{tpu_custom_call.1} parent=1 // pred_check_branch
      %75 = sbr.rel (0) target = $region29
    $region28: #{tpu_custom_call.1} parent=1 // pred_region
      _
    $region29: #{tpu_custom_call.1} parent=1 // pred_fallthru
      _
    // Predicated region
    $region30: #{tpu_custom_call.1} parent=1 // pred_check
      _
    $region31: #{tpu_custom_call.1} parent=1 // pred_check_branch
      %77 = sbr.rel (0) target = $region33
    $region32: #{tpu_custom_call.1} parent=1 // pred_region
      %78 = dma.done [#allocation3], 256
    $region33: #{tpu_custom_call.1} parent=1 // pred_fallthru
      _
    // Predicated region
    $region34: #{tpu_custom_call.1} parent=1 // pred_check
      _
    $region35: #{tpu_custom_call.1} parent=1 // pred_check_branch
      %80 = sbr.rel (0) target = $region37
    $region36: #{tpu_custom_call.1} parent=1 // pred_region
      %81 = dma.done [#allocation6], 512
    $region37: #{tpu_custom_call.1} parent=1 // pred_fallthru
      _
    // Predicated region
    $region38: #{tpu_custom_call.1} parent=1 // pred_check
      _
    $region39: #{tpu_custom_call.1} parent=1 // pred_check_branch
      %83 = sbr.rel (0) target = $region41
    $region40: #{tpu_custom_call.1} parent=1 // pred_region
      %84 = dma.done [#allocation6], 16
    $region41: #{tpu_custom_call.1} parent=1 // pred_fallthru
      _
    // Predicated region
    $region42: #{tpu_custom_call.1} parent=1 // pred_check
      _
    $region43: #{tpu_custom_call.1} parent=1 // pred_check_branch
      %86 = sbr.rel (0) target = $region45
    $region44: #{tpu_custom_call.1} parent=1 // pred_region
      %87 = dma.done [#allocation9], 512
    $region45: #{tpu_custom_call.1} parent=1 // pred_fallthru
      _
    // Predicated region
    $region46: #{tpu_custom_call.1} parent=1 // pred_check
      _
    $region47: #{tpu_custom_call.1} parent=1 // pred_check_branch
      %89 = sbr.rel (0) target = $region49
    $region48: #{tpu_custom_call.1} parent=1 // pred_region
      %90 = dma.done [#allocation9], 64
    $region49: #{tpu_custom_call.1} parent=1 // pred_fallthru
      _
    %v91 = vld [vmem:[#allocation2] sm:$0xff]
    %v92 = vld [vmem:[#allocation2 + $0x8] sm:$0xff]
    %v93 = vld [vmem:[%s1] sm:$0xff]
    %v94 = vld [vmem:[%s1 + $0x8] sm:$0xff]
    %v95 = vld [vmem:[#allocation5] sm:$0xff]
    %v96 = vld [vmem:[#allocation5 + $0x8] sm:$0xff]
    %v97 = vld [vmem:[#allocation5 + $0x10] sm:$0xff]
    %v98 = vld [vmem:[#allocation5 + $0x18] sm:$0xff]
    %v99 = vld [vmem:[#allocation7] sm:$0x1]
    %v101 = vlaneseq
    %v102 = vshrl.u32 %v101, 7
    %v103 = vsub.s32 0, %v102
    %v104 = vrot.slane %v99, %v103
    %vm106 = vcmask 261120
    %v108 = vsel %vm106, %v91, 0
    %v111 = vsel %vm106, %v92, 0
    %113 = vmatprep.subr.mxu0 0.0
    %114 = vmatpush1.msra.mxu0 %v95
    %115 = vmatprep.subr.mxu0 0.0
    %116 = vmatpush1.msra.mxu0 %v96
    %117 = vmatprep.subr.mxu0 0.0
    %118 = vmatpush1.msra.mxu0 %v97
    %119 = vmatprep.subr.mxu0 0.0
    %120 = vmatpush1.msra.mxu0 %v98
    %121 = vmatprep.subr.mxu0 0.0
    %122 = vmatpush1.msra.mxu0 0.0
    %123 = vmatprep.subr.mxu0 0.0
    %124 = vmatpush1.msra.mxu0 0.0
    %125 = vmatprep.subr.mxu0 0.0
    %126 = vmatpush1.msra.mxu0 0.0
    %127 = vmatprep.subr.mxu0 0.0
    %128 = vmatpush1.msra.mxu0 0.0
    %129 = vmatprep.subr.mxu0 0.0
    %130 = vmatpush1.msra.mxu0 0.0
    %131 = vmatprep.subr.mxu0 0.0
    %132 = vmatpush1.msra.mxu0 0.0
    %133 = vmatprep.subr.mxu0 0.0
    %134 = vmatpush1.msra.mxu0 0.0
    %135 = vmatprep.subr.mxu0 0.0
    %136 = vmatpush1.msra.mxu0 0.0
    %137 = vmatprep.subr.mxu0 0.0
    %138 = vmatpush1.msra.mxu0 0.0
    %139 = vmatprep.subr.mxu0 0.0
    %140 = vmatpush1.msra.mxu0 0.0
    %141 = vmatprep.subr.mxu0 0.0
    %142 = vmatpush1.msra.mxu0 0.0
    %143 = vmatprep.subr.mxu0 0.0
    %144 = vmatpush1.msra.mxu0 0.0
    %145 = vmatprep.subr.mxu0 0.0
    %146 = vmatpush1.msra.mxu0 0.0
    %147 = vmatprep.subr.mxu0 0.0
    %148 = vmatpush1.msra.mxu0 0.0
    %149 = vmatprep.subr.mxu0 0.0
    %150 = vmatpush1.msra.mxu0 0.0
    %151 = vmatprep.subr.mxu0 0.0
    %152 = vmatpush1.msra.mxu0 0.0
    %153 = vmatprep.subr.mxu0 0.0
    %154 = vmatpush1.msra.mxu0 0.0
    %155 = vmatprep.subr.mxu0 0.0
    %156 = vmatpush1.msra.mxu0 0.0
    %157 = vmatprep.subr.mxu0 0.0
    %158 = vmatpush1.msra.mxu0 0.0
    %159 = vmatprep.subr.mxu0 0.0
    %160 = vmatpush1.msra.mxu0 0.0
    %161 = vmatprep.subr.mxu0 0.0
    %162 = vmatpush1.msra.mxu0 0.0
    %163 = vmatprep.subr.mxu0 0.0
    %164 = vmatpush1.msra.mxu0 0.0
    %165 = vmatprep.subr.mxu0 0.0
    %166 = vmatpush1.msra.mxu0 0.0
    %167 = vmatprep.subr.mxu0 0.0
    %168 = vmatpush1.msra.mxu0 0.0
    %169 = vmatprep.subr.mxu0 0.0
    %170 = vmatpush1.msra.mxu0 0.0
    %171 = vmatprep.subr.mxu0 0.0
    %172 = vmatpush1.msra.mxu0 0.0
    %173 = vmatprep.subr.mxu0 0.0
    %174 = vmatpush1.msra.mxu0 0.0
    %175 = vmatprep.subr.mxu0 0.0
    %176 = vmatpush1.msra.mxu0 0.0
    %177 = vmatprep.mubr.f32.mxu0 0.0
    %178 = vmatmul.mubr.f32.gmra.mrb[0].mxu0 %v108
    %v179 = vpop.f32.mrb[0].mxu0
    %v180 = vadd.f32 %v104, %v179
    %v181 = vpop.f32.mrb[0].mxu0
    %182 = vmatprep.mubr.f32.mxu0 0.0
    %183 = vmatmul.mubr.f32.gmra.mrb[0].mxu0 %v111
    %v184 = vpop.f32.mrb[0].mxu0
    %v185 = vadd.f32 %v104, %v184
    %v186 = vpop.f32.mrb[0].mxu0
    %187 = vdwg.mxu0
    %v188 = vmul.f32 %v180, 0.35355338
    %v189 = vmul.f32 %v185, 0.35355338
    %vm190 = vcmp.eq.f32.partialorder %v93, 0.0
    %vm191 = vcmp.eq.f32.partialorder %v94, 0.0
    %v192 = vsel %vm190, 1, 0
    %v193 = vsel %vm191, 1, 0
    %194 = vset.pattern.permute.xlu0 0
    %195 = vperm.xlu0 %194, %v192
    %v196 = vpop.permute.xlu0 %195
    %197 = vset.pattern.permute.xlu0 0
    %198 = vperm.xlu0 %197, %v193
    %v199 = vpop.permute.xlu0 %198
    %vm200 = vcmp.eq.s32.totalorder %v196, 1
    %vm201 = vcmp.eq.s32.totalorder %v199, 1
    %203 = vrot.lane.b32.xlu0 %v180, 96
    %v204 = vpop.permute.xlu0 %203
    %vm205 = vcmask 64512
    %v207 = vsel %vm205, %v188, 0
    %v209 = vsel %vm205, %v204, 0
    %211 = vmatprep.subr.mxu0 0.0
    %212 = vmatpush1.xpose.msra.mxu0 %v209
    %213 = vmatprep.subr.mxu0 0.0
    %214 = vmatpush1.xpose.msra.mxu0 0.0
    %215 = vmatprep.subr.mxu0 0.0
    %216 = vmatpush1.xpose.msra.mxu0 0.0
    %217 = vmatprep.subr.mxu0 0.0
    %218 = vmatpush1.xpose.msra.mxu0 0.0
    %219 = vmatprep.subr.mxu0 0.0
    %220 = vmatpush1.xpose.msra.mxu0 0.0
    %221 = vmatprep.subr.mxu0 0.0
    %222 = vmatpush1.xpose.msra.mxu0 0.0
    %223 = vmatprep.subr.mxu0 0.0
    %224 = vmatpush1.xpose.msra.mxu0 0.0
    %225 = vmatprep.subr.mxu0 0.0
    %226 = vmatpush1.xpose.msra.mxu0 0.0
    %227 = vmatprep.subr.mxu0 0.0
    %228 = vmatpush1.xpose.msra.mxu0 0.0
    %229 = vmatprep.subr.mxu0 0.0
    %230 = vmatpush1.xpose.msra.mxu0 0.0
    %231 = vmatprep.subr.mxu0 0.0
    %232 = vmatpush1.xpose.msra.mxu0 0.0
    %233 = vmatprep.subr.mxu0 0.0
    %234 = vmatpush1.xpose.msra.mxu0 0.0
    %235 = vmatprep.subr.mxu0 0.0
    %236 = vmatpush1.xpose.msra.mxu0 0.0
    %237 = vmatprep.subr.mxu0 0.0
    %238 = vmatpush1.xpose.msra.mxu0 0.0
    %239 = vmatprep.subr.mxu0 0.0
    %240 = vmatpush1.xpose.msra.mxu0 0.0
    %241 = vmatprep.subr.mxu0 0.0
    %242 = vmatpush1.xpose.msra.mxu0 0.0
    %243 = vmatprep.subr.mxu0 0.0
    %244 = vmatpush1.xpose.msra.mxu0 0.0
    %245 = vmatprep.subr.mxu0 0.0
    %246 = vmatpush1.xpose.msra.mxu0 0.0
    %247 = vmatprep.subr.mxu0 0.0
    %248 = vmatpush1.xpose.msra.mxu0 0.0
    %249 = vmatprep.subr.mxu0 0.0
    %250 = vmatpush1.xpose.msra.mxu0 0.0
    %251 = vmatprep.subr.mxu0 0.0
    %252 = vmatpush1.xpose.msra.mxu0 0.0
    %253 = vmatprep.subr.mxu0 0.0
    %254 = vmatpush1.xpose.msra.mxu0 0.0
    %255 = vmatprep.subr.mxu0 0.0
    %256 = vmatpush1.xpose.msra.mxu0 0.0
    %257 = vmatprep.subr.mxu0 0.0
    %258 = vmatpush1.xpose.msra.mxu0 0.0
    %259 = vmatprep.subr.mxu0 0.0
    %260 = vmatpush1.xpose.msra.mxu0 0.0
    %261 = vmatprep.subr.mxu0 0.0
    %262 = vmatpush1.xpose.msra.mxu0 0.0
    %263 = vmatprep.subr.mxu0 0.0
    %264 = vmatpush1.xpose.msra.mxu0 0.0
    %265 = vmatprep.subr.mxu0 0.0
    %266 = vmatpush1.xpose.msra.mxu0 0.0
    %267 = vmatprep.subr.mxu0 0.0
    %268 = vmatpush1.xpose.msra.mxu0 0.0
    %269 = vmatprep.subr.mxu0 0.0
    %270 = vmatpush1.xpose.msra.mxu0 0.0
    %271 = vmatprep.subr.mxu0 0.0
    %272 = vmatpush1.xpose.msra.mxu0 0.0
    %273 = vmatprep.subr.mxu0 0.0
    %274 = vmatpush1.xpose.msra.mxu0 0.0
    %275 = vmatprep.mubr.f32.mxu0 0.0
    %276 = vmatmul.mubr.f32.gmra.mrb[0].mxu0 %v207
    %v277 = vpop.f32.mrb[0].mxu0
    %v278 = vadd.f32 0.0, %v277
    %v279 = vpop.f32.mrb[0].mxu0
    %280 = vdwg.mxu0
    %282 = vrot.lane.b32.xlu0 %v185, 96
    %v283 = vpop.permute.xlu0 %282
    %v285 = vsel %vm205, %v189, 0
    %v287 = vsel %vm205, %v283, 0
    %289 = vmatprep.subr.mxu0 0.0
    %290 = vmatpush1.xpose.msra.mxu0 %v287
    %291 = vmatprep.subr.mxu0 0.0
    %292 = vmatpush1.xpose.msra.mxu0 0.0
    %293 = vmatprep.subr.mxu0 0.0
    %294 = vmatpush1.xpose.msra.mxu0 0.0
    %295 = vmatprep.subr.mxu0 0.0
    %296 = vmatpush1.xpose.msra.mxu0 0.0
    %297 = vmatprep.subr.mxu0 0.0
    %298 = vmatpush1.xpose.msra.mxu0 0.0
    %299 = vmatprep.subr.mxu0 0.0
    %300 = vmatpush1.xpose.msra.mxu0 0.0
    %301 = vmatprep.subr.mxu0 0.0
    %302 = vmatpush1.xpose.msra.mxu0 0.0
    %303 = vmatprep.subr.mxu0 0.0
    %304 = vmatpush1.xpose.msra.mxu0 0.0
    %305 = vmatprep.subr.mxu0 0.0
    %306 = vmatpush1.xpose.msra.mxu0 0.0
    %307 = vmatprep.subr.mxu0 0.0
    %308 = vmatpush1.xpose.msra.mxu0 0.0
    %309 = vmatprep.subr.mxu0 0.0
    %310 = vmatpush1.xpose.msra.mxu0 0.0
    %311 = vmatprep.subr.mxu0 0.0
    %312 = vmatpush1.xpose.msra.mxu0 0.0
    %313 = vmatprep.subr.mxu0 0.0
    %314 = vmatpush1.xpose.msra.mxu0 0.0
    %315 = vmatprep.subr.mxu0 0.0
    %316 = vmatpush1.xpose.msra.mxu0 0.0
    %317 = vmatprep.subr.mxu0 0.0
    %318 = vmatpush1.xpose.msra.mxu0 0.0
    %319 = vmatprep.subr.mxu0 0.0
    %320 = vmatpush1.xpose.msra.mxu0 0.0
    %321 = vmatprep.subr.mxu0 0.0
    %322 = vmatpush1.xpose.msra.mxu0 0.0
    %323 = vmatprep.subr.mxu0 0.0
    %324 = vmatpush1.xpose.msra.mxu0 0.0
    %325 = vmatprep.subr.mxu0 0.0
    %326 = vmatpush1.xpose.msra.mxu0 0.0
    %327 = vmatprep.subr.mxu0 0.0
    %328 = vmatpush1.xpose.msra.mxu0 0.0
    %329 = vmatprep.subr.mxu0 0.0
    %330 = vmatpush1.xpose.msra.mxu0 0.0
    %331 = vmatprep.subr.mxu0 0.0
    %332 = vmatpush1.xpose.msra.mxu0 0.0
    %333 = vmatprep.subr.mxu0 0.0
    %334 = vmatpush1.xpose.msra.mxu0 0.0
    %335 = vmatprep.subr.mxu0 0.0
    %336 = vmatpush1.xpose.msra.mxu0 0.0
    %337 = vmatprep.subr.mxu0 0.0
    %338 = vmatpush1.xpose.msra.mxu0 0.0
    %339 = vmatprep.subr.mxu0 0.0
    %340 = vmatpush1.xpose.msra.mxu0 0.0
    %341 = vmatprep.subr.mxu0 0.0
    %342 = vmatpush1.xpose.msra.mxu0 0.0
    %343 = vmatprep.subr.mxu0 0.0
    %344 = vmatpush1.xpose.msra.mxu0 0.0
    %345 = vmatprep.subr.mxu0 0.0
    %346 = vmatpush1.xpose.msra.mxu0 0.0
    %347 = vmatprep.subr.mxu0 0.0
    %348 = vmatpush1.xpose.msra.mxu0 0.0
    %349 = vmatprep.subr.mxu0 0.0
    %350 = vmatpush1.xpose.msra.mxu0 0.0
    %351 = vmatprep.subr.mxu0 0.0
    %352 = vmatpush1.xpose.msra.mxu0 0.0
    %353 = vmatprep.mubr.f32.mxu0 0.0
    %354 = vmatmul.mubr.f32.gmra.mrb[0].mxu0 %v285
    %v355 = vpop.f32.mrb[0].mxu0
    %v356 = vadd.f32 0.0, %v355
    %v357 = vpop.f32.mrb[0].mxu0
    %358 = vdwg.mxu0
    %v359 = vsel %vm200, -1e+09, %v278
    %v360 = vsel %vm201, -1e+09, %v356
    %v361 = vsel %vm205, %v359, -inf
    %362 = vmax.xlane.f32.xlu0 %v361
    %v363 = vpop.xlane.xlu0 %362
    %v364 = vsel %vm205, %v360, -inf
    %365 = vmax.xlane.f32.xlu0 %v364
    %v366 = vpop.xlane.xlu0 %365
    %v367 = vsub.f32 %v359, %v363
    %v368 = vsub.f32 %v360, %v366
    %v369 = vmul.f32 %v367, 1.442695
    %v370 = vpow.pop %v369
    %v371 = vmul.f32 %v368, 1.442695
    %v372 = vpow.pop %v371
    %v373 = vsel %vm205, %v370, 0.0
    %374 = vadd.xlane.f32.xlu0 %v373
    %v375 = vpop.xlane.xlu0 %374
    %v376 = vsel %vm205, %v372, 0.0
    %377 = vadd.xlane.f32.xlu0 %v376
    %v378 = vpop.xlane.xlu0 %377
    %v379 = vrcp.pop %v375
    %v380 = vrcp.pop %v378
    %v381 = vmul.f32 %v370, %v379
    %v382 = vmul.f32 %v372, %v380
    %383 = vrot.lane.b32.xlu0 %v180, 64
    %v384 = vpop.permute.xlu0 %383
    %v387 = vsel %vm205, %v381, 0
    %389 = vmatprep.subr.mxu0 0.0
    %390 = vmatpush1.msra.mxu0 %v384
    %391 = vmatprep.subr.mxu0 0.0
    %392 = vmatpush1.msra.mxu0 0.0
    %393 = vmatprep.subr.mxu0 0.0
    %394 = vmatpush1.msra.mxu0 0.0
    %395 = vmatprep.subr.mxu0 0.0
    %396 = vmatpush1.msra.mxu0 0.0
    %397 = vmatprep.subr.mxu0 0.0
    %398 = vmatpush1.msra.mxu0 0.0
    %399 = vmatprep.subr.mxu0 0.0
    %400 = vmatpush1.msra.mxu0 0.0
    %401 = vmatprep.subr.mxu0 0.0
    %402 = vmatpush1.msra.mxu0 0.0
    %403 = vmatprep.subr.mxu0 0.0
    %404 = vmatpush1.msra.mxu0 0.0
    %405 = vmatprep.subr.mxu0 0.0
    %406 = vmatpush1.msra.mxu0 0.0
    %407 = vmatprep.subr.mxu0 0.0
    %408 = vmatpush1.msra.mxu0 0.0
    %409 = vmatprep.subr.mxu0 0.0
    %410 = vmatpush1.msra.mxu0 0.0
    %411 = vmatprep.subr.mxu0 0.0
    %412 = vmatpush1.msra.mxu0 0.0
    %413 = vmatprep.subr.mxu0 0.0
    %414 = vmatpush1.msra.mxu0 0.0
    %415 = vmatprep.subr.mxu0 0.0
    %416 = vmatpush1.msra.mxu0 0.0
    %417 = vmatprep.subr.mxu0 0.0
    %418 = vmatpush1.msra.mxu0 0.0
    %419 = vmatprep.subr.mxu0 0.0
    %420 = vmatpush1.msra.mxu0 0.0
    %421 = vmatprep.subr.mxu0 0.0
    %422 = vmatpush1.msra.mxu0 0.0
    %423 = vmatprep.subr.mxu0 0.0
    %424 = vmatpush1.msra.mxu0 0.0
    %425 = vmatprep.subr.mxu0 0.0
    %426 = vmatpush1.msra.mxu0 0.0
    %427 = vmatprep.subr.mxu0 0.0
    %428 = vmatpush1.msra.mxu0 0.0
    %429 = vmatprep.subr.mxu0 0.0
    %430 = vmatpush1.msra.mxu0 0.0
    %431 = vmatprep.subr.mxu0 0.0
    %432 = vmatpush1.msra.mxu0 0.0
    %433 = vmatprep.subr.mxu0 0.0
    %434 = vmatpush1.msra.mxu0 0.0
    %435 = vmatprep.subr.mxu0 0.0
    %436 = vmatpush1.msra.mxu0 0.0
    %437 = vmatprep.subr.mxu0 0.0
    %438 = vmatpush1.msra.mxu0 0.0
    %439 = vmatprep.subr.mxu0 0.0
    %440 = vmatpush1.msra.mxu0 0.0
    %441 = vmatprep.subr.mxu0 0.0
    %442 = vmatpush1.msra.mxu0 0.0
    %443 = vmatprep.subr.mxu0 0.0
    %444 = vmatpush1.msra.mxu0 0.0
    %445 = vmatprep.subr.mxu0 0.0
    %446 = vmatpush1.msra.mxu0 0.0
    %447 = vmatprep.subr.mxu0 0.0
    %448 = vmatpush1.msra.mxu0 0.0
    %449 = vmatprep.subr.mxu0 0.0
    %450 = vmatpush1.msra.mxu0 0.0
    %451 = vmatprep.subr.mxu0 0.0
    %452 = vmatpush1.msra.mxu0 0.0
    %453 = vmatprep.mubr.f32.mxu0 0.0
    %454 = vmatmul.mubr.f32.gmra.mrb[0].mxu0 %v387
    %v455 = vpop.f32.mrb[0].mxu0
    %v456 = vadd.f32 0.0, %v455
    %v457 = vpop.f32.mrb[0].mxu0
    %458 = vdwg.mxu0
    %459 = vrot.lane.b32.xlu0 %v185, 64
    %v460 = vpop.permute.xlu0 %459
    %v463 = vsel %vm205, %v382, 0
    %465 = vmatprep.subr.mxu0 0.0
    %466 = vmatpush1.msra.mxu0 %v460
    %467 = vmatprep.subr.mxu0 0.0
    %468 = vmatpush1.msra.mxu0 0.0
    %469 = vmatprep.subr.mxu0 0.0
    %470 = vmatpush1.msra.mxu0 0.0
    %471 = vmatprep.subr.mxu0 0.0
    %472 = vmatpush1.msra.mxu0 0.0
    %473 = vmatprep.subr.mxu0 0.0
    %474 = vmatpush1.msra.mxu0 0.0
    %475 = vmatprep.subr.mxu0 0.0
    %476 = vmatpush1.msra.mxu0 0.0
    %477 = vmatprep.subr.mxu0 0.0
    %478 = vmatpush1.msra.mxu0 0.0
    %479 = vmatprep.subr.mxu0 0.0
    %480 = vmatpush1.msra.mxu0 0.0
    %481 = vmatprep.subr.mxu0 0.0
    %482 = vmatpush1.msra.mxu0 0.0
    %483 = vmatprep.subr.mxu0 0.0
    %484 = vmatpush1.msra.mxu0 0.0
    %485 = vmatprep.subr.mxu0 0.0
    %486 = vmatpush1.msra.mxu0 0.0
    %487 = vmatprep.subr.mxu0 0.0
    %488 = vmatpush1.msra.mxu0 0.0
    %489 = vmatprep.subr.mxu0 0.0
    %490 = vmatpush1.msra.mxu0 0.0
    %491 = vmatprep.subr.mxu0 0.0
    %492 = vmatpush1.msra.mxu0 0.0
    %493 = vmatprep.subr.mxu0 0.0
    %494 = vmatpush1.msra.mxu0 0.0
    %495 = vmatprep.subr.mxu0 0.0
    %496 = vmatpush1.msra.mxu0 0.0
    %497 = vmatprep.subr.mxu0 0.0
    %498 = vmatpush1.msra.mxu0 0.0
    %499 = vmatprep.subr.mxu0 0.0
    %500 = vmatpush1.msra.mxu0 0.0
    %501 = vmatprep.subr.mxu0 0.0
    %502 = vmatpush1.msra.mxu0 0.0
    %503 = vmatprep.subr.mxu0 0.0
    %504 = vmatpush1.msra.mxu0 0.0
    %505 = vmatprep.subr.mxu0 0.0
    %506 = vmatpush1.msra.mxu0 0.0
    %507 = vmatprep.subr.mxu0 0.0
    %508 = vmatpush1.msra.mxu0 0.0
    %509 = vmatprep.subr.mxu0 0.0
    %510 = vmatpush1.msra.mxu0 0.0
    %511 = vmatprep.subr.mxu0 0.0
    %512 = vmatpush1.msra.mxu0 0.0
    %513 = vmatprep.subr.mxu0 0.0
    %514 = vmatpush1.msra.mxu0 0.0
    %515 = vmatprep.subr.mxu0 0.0
    %516 = vmatpush1.msra.mxu0 0.0
    %517 = vmatprep.subr.mxu0 0.0
    %518 = vmatpush1.msra.mxu0 0.0
    %519 = vmatprep.subr.mxu0 0.0
    %520 = vmatpush1.msra.mxu0 0.0
    %521 = vmatprep.subr.mxu0 0.0
    %522 = vmatpush1.msra.mxu0 0.0
    %523 = vmatprep.subr.mxu0 0.0
    %524 = vmatpush1.msra.mxu0 0.0
    %525 = vmatprep.subr.mxu0 0.0
    %526 = vmatpush1.msra.mxu0 0.0
    %527 = vmatprep.subr.mxu0 0.0
    %528 = vmatpush1.msra.mxu0 0.0
    %529 = vmatprep.mubr.f32.mxu0 0.0
    %530 = vmatmul.mubr.f32.gmra.mrb[0].mxu0 %v463
    %v531 = vpop.f32.mrb[0].mxu0
    %v532 = vadd.f32 0.0, %v531
    %v533 = vpop.f32.mrb[0].mxu0
    %534 = vdwg.mxu0
    %535 = vrot.lane.b32.xlu0 %v188, 120
    %v536 = vpop.permute.xlu0 %535
    %537 = vrot.lane.b32.xlu0 %v180, 88
    %v538 = vpop.permute.xlu0 %537
    %v539 = vsel %vm205, %v536, 0
    %v541 = vsel %vm205, %v538, 0
    %543 = vmatprep.subr.mxu0 0.0
    %544 = vmatpush1.xpose.msra.mxu0 %v541
    %545 = vmatprep.subr.mxu0 0.0
    %546 = vmatpush1.xpose.msra.mxu0 0.0
    %547 = vmatprep.subr.mxu0 0.0
    %548 = vmatpush1.xpose.msra.mxu0 0.0
    %549 = vmatprep.subr.mxu0 0.0
    %550 = vmatpush1.xpose.msra.mxu0 0.0
    %551 = vmatprep.subr.mxu0 0.0
    %552 = vmatpush1.xpose.msra.mxu0 0.0
    %553 = vmatprep.subr.mxu0 0.0
    %554 = vmatpush1.xpose.msra.mxu0 0.0
    %555 = vmatprep.subr.mxu0 0.0
    %556 = vmatpush1.xpose.msra.mxu0 0.0
    %557 = vmatprep.subr.mxu0 0.0
    %558 = vmatpush1.xpose.msra.mxu0 0.0
    %559 = vmatprep.subr.mxu0 0.0
    %560 = vmatpush1.xpose.msra.mxu0 0.0
    %561 = vmatprep.subr.mxu0 0.0
    %562 = vmatpush1.xpose.msra.mxu0 0.0
    %563 = vmatprep.subr.mxu0 0.0
    %564 = vmatpush1.xpose.msra.mxu0 0.0
    %565 = vmatprep.subr.mxu0 0.0
    %566 = vmatpush1.xpose.msra.mxu0 0.0
    %567 = vmatprep.subr.mxu0 0.0
    %568 = vmatpush1.xpose.msra.mxu0 0.0
    %569 = vmatprep.subr.mxu0 0.0
    %570 = vmatpush1.xpose.msra.mxu0 0.0
    %571 = vmatprep.subr.mxu0 0.0
    %572 = vmatpush1.xpose.msra.mxu0 0.0
    %573 = vmatprep.subr.mxu0 0.0
    %574 = vmatpush1.xpose.msra.mxu0 0.0
    %575 = vmatprep.subr.mxu0 0.0
    %576 = vmatpush1.xpose.msra.mxu0 0.0
    %577 = vmatprep.subr.mxu0 0.0
    %578 = vmatpush1.xpose.msra.mxu0 0.0
    %579 = vmatprep.subr.mxu0 0.0
    %580 = vmatpush1.xpose.msra.mxu0 0.0
    %581 = vmatprep.subr.mxu0 0.0
    %582 = vmatpush1.xpose.msra.mxu0 0.0
    %583 = vmatprep.subr.mxu0 0.0
    %584 = vmatpush1.xpose.msra.mxu0 0.0
    %585 = vmatprep.subr.mxu0 0.0
    %586 = vmatpush1.xpose.msra.mxu0 0.0
    %587 = vmatprep.subr.mxu0 0.0
    %588 = vmatpush1.xpose.msra.mxu0 0.0
    %589 = vmatprep.subr.mxu0 0.0
    %590 = vmatpush1.xpose.msra.mxu0 0.0
    %591 = vmatprep.subr.mxu0 0.0
    %592 = vmatpush1.xpose.msra.mxu0 0.0
    %593 = vmatprep.subr.mxu0 0.0
    %594 = vmatpush1.xpose.msra.mxu0 0.0
    %595 = vmatprep.subr.mxu0 0.0
    %596 = vmatpush1.xpose.msra.mxu0 0.0
    %597 = vmatprep.subr.mxu0 0.0
    %598 = vmatpush1.xpose.msra.mxu0 0.0
    %599 = vmatprep.subr.mxu0 0.0
    %600 = vmatpush1.xpose.msra.mxu0 0.0
    %601 = vmatprep.subr.mxu0 0.0
    %602 = vmatpush1.xpose.msra.mxu0 0.0
    %603 = vmatprep.subr.mxu0 0.0
    %604 = vmatpush1.xpose.msra.mxu0 0.0
    %605 = vmatprep.subr.mxu0 0.0
    %606 = vmatpush1.xpose.msra.mxu0 0.0
    %607 = vmatprep.mubr.f32.mxu0 0.0
    %608 = vmatmul.mubr.f32.gmra.mrb[0].mxu0 %v539
    %v609 = vpop.f32.mrb[0].mxu0
    %v610 = vadd.f32 0.0, %v609
    %v611 = vpop.f32.mrb[0].mxu0
    %612 = vdwg.mxu0
    %613 = vrot.lane.b32.xlu0 %v189, 120
    %v614 = vpop.permute.xlu0 %613
    %615 = vrot.lane.b32.xlu0 %v185, 88
    %v616 = vpop.permute.xlu0 %615
    %v617 = vsel %vm205, %v614, 0
    %v619 = vsel %vm205, %v616, 0
    %621 = vmatprep.subr.mxu0 0.0
    %622 = vmatpush1.xpose.msra.mxu0 %v619
    %623 = vmatprep.subr.mxu0 0.0
    %624 = vmatpush1.xpose.msra.mxu0 0.0
    %625 = vmatprep.subr.mxu0 0.0
    %626 = vmatpush1.xpose.msra.mxu0 0.0
    %627 = vmatprep.subr.mxu0 0.0
    %628 = vmatpush1.xpose.msra.mxu0 0.0
    %629 = vmatprep.subr.mxu0 0.0
    %630 = vmatpush1.xpose.msra.mxu0 0.0
    %631 = vmatprep.subr.mxu0 0.0
    %632 = vmatpush1.xpose.msra.mxu0 0.0
    %633 = vmatprep.subr.mxu0 0.0
    %634 = vmatpush1.xpose.msra.mxu0 0.0
    %635 = vmatprep.subr.mxu0 0.0
    %636 = vmatpush1.xpose.msra.mxu0 0.0
    %637 = vmatprep.subr.mxu0 0.0
    %638 = vmatpush1.xpose.msra.mxu0 0.0
    %639 = vmatprep.subr.mxu0 0.0
    %640 = vmatpush1.xpose.msra.mxu0 0.0
    %641 = vmatprep.subr.mxu0 0.0
    %642 = vmatpush1.xpose.msra.mxu0 0.0
    %643 = vmatprep.subr.mxu0 0.0
    %644 = vmatpush1.xpose.msra.mxu0 0.0
    %645 = vmatprep.subr.mxu0 0.0
    %646 = vmatpush1.xpose.msra.mxu0 0.0
    %647 = vmatprep.subr.mxu0 0.0
    %648 = vmatpush1.xpose.msra.mxu0 0.0
    %649 = vmatprep.subr.mxu0 0.0
    %650 = vmatpush1.xpose.msra.mxu0 0.0
    %651 = vmatprep.subr.mxu0 0.0
    %652 = vmatpush1.xpose.msra.mxu0 0.0
    %653 = vmatprep.subr.mxu0 0.0
    %654 = vmatpush1.xpose.msra.mxu0 0.0
    %655 = vmatprep.subr.mxu0 0.0
    %656 = vmatpush1.xpose.msra.mxu0 0.0
    %657 = vmatprep.subr.mxu0 0.0
    %658 = vmatpush1.xpose.msra.mxu0 0.0
    %659 = vmatprep.subr.mxu0 0.0
    %660 = vmatpush1.xpose.msra.mxu0 0.0
    %661 = vmatprep.subr.mxu0 0.0
    %662 = vmatpush1.xpose.msra.mxu0 0.0
    %663 = vmatprep.subr.mxu0 0.0
    %664 = vmatpush1.xpose.msra.mxu0 0.0
    %665 = vmatprep.subr.mxu0 0.0
    %666 = vmatpush1.xpose.msra.mxu0 0.0
    %667 = vmatprep.subr.mxu0 0.0
    %668 = vmatpush1.xpose.msra.mxu0 0.0
    %669 = vmatprep.subr.mxu0 0.0
    %670 = vmatpush1.xpose.msra.mxu0 0.0
    %671 = vmatprep.subr.mxu0 0.0
    %672 = vmatpush1.xpose.msra.mxu0 0.0
    %673 = vmatprep.subr.mxu0 0.0
    %674 = vmatpush1.xpose.msra.mxu0 0.0
    %675 = vmatprep.subr.mxu0 0.0
    %676 = vmatpush1.xpose.msra.mxu0 0.0
    %677 = vmatprep.subr.mxu0 0.0
    %678 = vmatpush1.xpose.msra.mxu0 0.0
    %679 = vmatprep.subr.mxu0 0.0
    %680 = vmatpush1.xpose.msra.mxu0 0.0
    %681 = vmatprep.subr.mxu0 0.0
    %682 = vmatpush1.xpose.msra.mxu0 0.0
    %683 = vmatprep.subr.mxu0 0.0
    %684 = vmatpush1.xpose.msra.mxu0 0.0
    %685 = vmatprep.mubr.f32.mxu0 0.0
    %686 = vmatmul.mubr.f32.gmra.mrb[0].mxu0 %v617
    %v687 = vpop.f32.mrb[0].mxu0
    %v688 = vadd.f32 0.0, %v687
    %v689 = vpop.f32.mrb[0].mxu0
    %690 = vdwg.mxu0
    %v691 = vsel %vm200, -1e+09, %v610
    %v692 = vsel %vm201, -1e+09, %v688
    %v693 = vsel %vm205, %v691, -inf
    %694 = vmax.xlane.f32.xlu0 %v693
    %v695 = vpop.xlane.xlu0 %694
    %v696 = vsel %vm205, %v692, -inf
    %697 = vmax.xlane.f32.xlu0 %v696
    %v698 = vpop.xlane.xlu0 %697
    %v699 = vsub.f32 %v691, %v695
    %v700 = vsub.f32 %v692, %v698
    %v701 = vmul.f32 %v699, 1.442695
    %v702 = vpow.pop %v701
    %v703 = vmul.f32 %v700, 1.442695
    %v704 = vpow.pop %v703
    %v705 = vsel %vm205, %v702, 0.0
    %706 = vadd.xlane.f32.xlu0 %v705
    %v707 = vpop.xlane.xlu0 %706
    %v708 = vsel %vm205, %v704, 0.0
    %709 = vadd.xlane.f32.xlu0 %v708
    %v710 = vpop.xlane.xlu0 %709
    %v711 = vrcp.pop %v707
    %v712 = vrcp.pop %v710
    %v713 = vmul.f32 %v702, %v711
    %v714 = vmul.f32 %v704, %v712
    %715 = vrot.lane.b32.xlu0 %v180, 56
    %v716 = vpop.permute.xlu0 %715
    %v719 = vsel %vm205, %v713, 0
    %721 = vmatprep.subr.mxu0 0.0
    %722 = vmatpush1.msra.mxu0 %v716
    %723 = vmatprep.subr.mxu0 0.0
    %724 = vmatpush1.msra.mxu0 0.0
    %725 = vmatprep.subr.mxu0 0.0
    %726 = vmatpush1.msra.mxu0 0.0
    %727 = vmatprep.subr.mxu0 0.0
    %728 = vmatpush1.msra.mxu0 0.0
    %729 = vmatprep.subr.mxu0 0.0
    %730 = vmatpush1.msra.mxu0 0.0
    %731 = vmatprep.subr.mxu0 0.0
    %732 = vmatpush1.msra.mxu0 0.0
    %733 = vmatprep.subr.mxu0 0.0
    %734 = vmatpush1.msra.mxu0 0.0
    %735 = vmatprep.subr.mxu0 0.0
    %736 = vmatpush1.msra.mxu0 0.0
    %737 = vmatprep.subr.mxu0 0.0
    %738 = vmatpush1.msra.mxu0 0.0
    %739 = vmatprep.subr.mxu0 0.0
    %740 = vmatpush1.msra.mxu0 0.0
    %741 = vmatprep.subr.mxu0 0.0
    %742 = vmatpush1.msra.mxu0 0.0
    %743 = vmatprep.subr.mxu0 0.0
    %744 = vmatpush1.msra.mxu0 0.0
    %745 = vmatprep.subr.mxu0 0.0
    %746 = vmatpush1.msra.mxu0 0.0
    %747 = vmatprep.subr.mxu0 0.0
    %748 = vmatpush1.msra.mxu0 0.0
    %749 = vmatprep.subr.mxu0 0.0
    %750 = vmatpush1.msra.mxu0 0.0
    %751 = vmatprep.subr.mxu0 0.0
    %752 = vmatpush1.msra.mxu0 0.0
    %753 = vmatprep.subr.mxu0 0.0
    %754 = vmatpush1.msra.mxu0 0.0
    %755 = vmatprep.subr.mxu0 0.0
    %756 = vmatpush1.msra.mxu0 0.0
    %757 = vmatprep.subr.mxu0 0.0
    %758 = vmatpush1.msra.mxu0 0.0
    %759 = vmatprep.subr.mxu0 0.0
    %760 = vmatpush1.msra.mxu0 0.0
    %761 = vmatprep.subr.mxu0 0.0
    %762 = vmatpush1.msra.mxu0 0.0
    %763 = vmatprep.subr.mxu0 0.0
    %764 = vmatpush1.msra.mxu0 0.0
    %765 = vmatprep.subr.mxu0 0.0
    %766 = vmatpush1.msra.mxu0 0.0
    %767 = vmatprep.subr.mxu0 0.0
    %768 = vmatpush1.msra.mxu0 0.0
    %769 = vmatprep.subr.mxu0 0.0
    %770 = vmatpush1.msra.mxu0 0.0
    %771 = vmatprep.subr.mxu0 0.0
    %772 = vmatpush1.msra.mxu0 0.0
    %773 = vmatprep.subr.mxu0 0.0
    %774 = vmatpush1.msra.mxu0 0.0
    %775 = vmatprep.subr.mxu0 0.0
    %776 = vmatpush1.msra.mxu0 0.0
    %777 = vmatprep.subr.mxu0 0.0
    %778 = vmatpush1.msra.mxu0 0.0
    %779 = vmatprep.subr.mxu0 0.0
    %780 = vmatpush1.msra.mxu0 0.0
    %781 = vmatprep.subr.mxu0 0.0
    %782 = vmatpush1.msra.mxu0 0.0
    %783 = vmatprep.subr.mxu0 0.0
    %784 = vmatpush1.msra.mxu0 0.0
    %785 = vmatprep.mubr.f32.mxu0 0.0
    %786 = vmatmul.mubr.f32.gmra.mrb[0].mxu0 %v719
    %v787 = vpop.f32.mrb[0].mxu0
    %v788 = vadd.f32 0.0, %v787
    %v789 = vpop.f32.mrb[0].mxu0
    %790 = vdwg.mxu0
    %791 = vrot.lane.b32.xlu0 %v185, 56
    %v792 = vpop.permute.xlu0 %791
    %v795 = vsel %vm205, %v714, 0
    %797 = vmatprep.subr.mxu0 0.0
    %798 = vmatpush1.msra.mxu0 %v792
    %799 = vmatprep.subr.mxu0 0.0
    %800 = vmatpush1.msra.mxu0 0.0
    %801 = vmatprep.subr.mxu0 0.0
    %802 = vmatpush1.msra.mxu0 0.0
    %803 = vmatprep.subr.mxu0 0.0
    %804 = vmatpush1.msra.mxu0 0.0
    %805 = vmatprep.subr.mxu0 0.0
    %806 = vmatpush1.msra.mxu0 0.0
    %807 = vmatprep.subr.mxu0 0.0
    %808 = vmatpush1.msra.mxu0 0.0
    %809 = vmatprep.subr.mxu0 0.0
    %810 = vmatpush1.msra.mxu0 0.0
    %811 = vmatprep.subr.mxu0 0.0
    %812 = vmatpush1.msra.mxu0 0.0
    %813 = vmatprep.subr.mxu0 0.0
    %814 = vmatpush1.msra.mxu0 0.0
    %815 = vmatprep.subr.mxu0 0.0
    %816 = vmatpush1.msra.mxu0 0.0
    %817 = vmatprep.subr.mxu0 0.0
    %818 = vmatpush1.msra.mxu0 0.0
    %819 = vmatprep.subr.mxu0 0.0
    %820 = vmatpush1.msra.mxu0 0.0
    %821 = vmatprep.subr.mxu0 0.0
    %822 = vmatpush1.msra.mxu0 0.0
    %823 = vmatprep.subr.mxu0 0.0
    %824 = vmatpush1.msra.mxu0 0.0
    %825 = vmatprep.subr.mxu0 0.0
    %826 = vmatpush1.msra.mxu0 0.0
    %827 = vmatprep.subr.mxu0 0.0
    %828 = vmatpush1.msra.mxu0 0.0
    %829 = vmatprep.subr.mxu0 0.0
    %830 = vmatpush1.msra.mxu0 0.0
    %831 = vmatprep.subr.mxu0 0.0
    %832 = vmatpush1.msra.mxu0 0.0
    %833 = vmatprep.subr.mxu0 0.0
    %834 = vmatpush1.msra.mxu0 0.0
    %835 = vmatprep.subr.mxu0 0.0
    %836 = vmatpush1.msra.mxu0 0.0
    %837 = vmatprep.subr.mxu0 0.0
    %838 = vmatpush1.msra.mxu0 0.0
    %839 = vmatprep.subr.mxu0 0.0
    %840 = vmatpush1.msra.mxu0 0.0
    %841 = vmatprep.subr.mxu0 0.0
    %842 = vmatpush1.msra.mxu0 0.0
    %843 = vmatprep.subr.mxu0 0.0
    %844 = vmatpush1.msra.mxu0 0.0
    %845 = vmatprep.subr.mxu0 0.0
    %846 = vmatpush1.msra.mxu0 0.0
    %847 = vmatprep.subr.mxu0 0.0
    %848 = vmatpush1.msra.mxu0 0.0
    %849 = vmatprep.subr.mxu0 0.0
    %850 = vmatpush1.msra.mxu0 0.0
    %851 = vmatprep.subr.mxu0 0.0
    %852 = vmatpush1.msra.mxu0 0.0
    %853 = vmatprep.subr.mxu0 0.0
    %854 = vmatpush1.msra.mxu0 0.0
    %855 = vmatprep.subr.mxu0 0.0
    %856 = vmatpush1.msra.mxu0 0.0
    %857 = vmatprep.subr.mxu0 0.0
    %858 = vmatpush1.msra.mxu0 0.0
    %859 = vmatprep.subr.mxu0 0.0
    %860 = vmatpush1.msra.mxu0 0.0
    %861 = vmatprep.mubr.f32.mxu0 0.0
    %862 = vmatmul.mubr.f32.gmra.mrb[0].mxu0 %v795
    %v863 = vpop.f32.mrb[0].mxu0
    %v864 = vadd.f32 0.0, %v863
    %v865 = vpop.f32.mrb[0].mxu0
    %866 = vdwg.mxu0
    %867 = vrot.lane.b32.xlu0 %v188, 112
    %v868 = vpop.permute.xlu0 %867
    %869 = vrot.lane.b32.xlu0 %v180, 80
    %v870 = vpop.permute.xlu0 %869
    %v871 = vsel %vm205, %v868, 0
    %v873 = vsel %vm205, %v870, 0
    %875 = vmatprep.subr.mxu0 0.0
    %876 = vmatpush1.xpose.msra.mxu0 %v873
    %877 = vmatprep.subr.mxu0 0.0
    %878 = vmatpush1.xpose.msra.mxu0 0.0
    %879 = vmatprep.subr.mxu0 0.0
    %880 = vmatpush1.xpose.msra.mxu0 0.0
    %881 = vmatprep.subr.mxu0 0.0
    %882 = vmatpush1.xpose.msra.mxu0 0.0
    %883 = vmatprep.subr.mxu0 0.0
    %884 = vmatpush1.xpose.msra.mxu0 0.0
    %885 = vmatprep.subr.mxu0 0.0
    %886 = vmatpush1.xpose.msra.mxu0 0.0
    %887 = vmatprep.subr.mxu0 0.0
    %888 = vmatpush1.xpose.msra.mxu0 0.0
    %889 = vmatprep.subr.mxu0 0.0
    %890 = vmatpush1.xpose.msra.mxu0 0.0
    %891 = vmatprep.subr.mxu0 0.0
    %892 = vmatpush1.xpose.msra.mxu0 0.0
    %893 = vmatprep.subr.mxu0 0.0
    %894 = vmatpush1.xpose.msra.mxu0 0.0
    %895 = vmatprep.subr.mxu0 0.0
    %896 = vmatpush1.xpose.msra.mxu0 0.0
    %897 = vmatprep.subr.mxu0 0.0
    %898 = vmatpush1.xpose.msra.mxu0 0.0
    %899 = vmatprep.subr.mxu0 0.0
    %900 = vmatpush1.xpose.msra.mxu0 0.0
    %901 = vmatprep.subr.mxu0 0.0
    %902 = vmatpush1.xpose.msra.mxu0 0.0
    %903 = vmatprep.subr.mxu0 0.0
    %904 = vmatpush1.xpose.msra.mxu0 0.0
    %905 = vmatprep.subr.mxu0 0.0
    %906 = vmatpush1.xpose.msra.mxu0 0.0
    %907 = vmatprep.subr.mxu0 0.0
    %908 = vmatpush1.xpose.msra.mxu0 0.0
    %909 = vmatprep.subr.mxu0 0.0
    %910 = vmatpush1.xpose.msra.mxu0 0.0
    %911 = vmatprep.subr.mxu0 0.0
    %912 = vmatpush1.xpose.msra.mxu0 0.0
    %913 = vmatprep.subr.mxu0 0.0
    %914 = vmatpush1.xpose.msra.mxu0 0.0
    %915 = vmatprep.subr.mxu0 0.0
    %916 = vmatpush1.xpose.msra.mxu0 0.0
    %917 = vmatprep.subr.mxu0 0.0
    %918 = vmatpush1.xpose.msra.mxu0 0.0
    %919 = vmatprep.subr.mxu0 0.0
    %920 = vmatpush1.xpose.msra.mxu0 0.0
    %921 = vmatprep.subr.mxu0 0.0
    %922 = vmatpush1.xpose.msra.mxu0 0.0
    %923 = vmatprep.subr.mxu0 0.0
    %924 = vmatpush1.xpose.msra.mxu0 0.0
    %925 = vmatprep.subr.mxu0 0.0
    %926 = vmatpush1.xpose.msra.mxu0 0.0
    %927 = vmatprep.subr.mxu0 0.0
    %928 = vmatpush1.xpose.msra.mxu0 0.0
    %929 = vmatprep.subr.mxu0 0.0
    %930 = vmatpush1.xpose.msra.mxu0 0.0
    %931 = vmatprep.subr.mxu0 0.0
    %932 = vmatpush1.xpose.msra.mxu0 0.0
    %933 = vmatprep.subr.mxu0 0.0
    %934 = vmatpush1.xpose.msra.mxu0 0.0
    %935 = vmatprep.subr.mxu0 0.0
    %936 = vmatpush1.xpose.msra.mxu0 0.0
    %937 = vmatprep.subr.mxu0 0.0
    %938 = vmatpush1.xpose.msra.mxu0 0.0
    %939 = vmatprep.mubr.f32.mxu0 0.0
    %940 = vmatmul.mubr.f32.gmra.mrb[0].mxu0 %v871
    %v941 = vpop.f32.mrb[0].mxu0
    %v942 = vadd.f32 0.0, %v941
    %v943 = vpop.f32.mrb[0].mxu0
    %944 = vdwg.mxu0
    %945 = vrot.lane.b32.xlu0 %v189, 112
    %v946 = vpop.permute.xlu0 %945
    %947 = vrot.lane.b32.xlu0 %v185, 80
    %v948 = vpop.permute.xlu0 %947
    %v949 = vsel %vm205, %v946, 0
    %v951 = vsel %vm205, %v948, 0
    %953 = vmatprep.subr.mxu0 0.0
    %954 = vmatpush1.xpose.msra.mxu0 %v951
    %955 = vmatprep.subr.mxu0 0.0
    %956 = vmatpush1.xpose.msra.mxu0 0.0
    %957 = vmatprep.subr.mxu0 0.0
    %958 = vmatpush1.xpose.msra.mxu0 0.0
    %959 = vmatprep.subr.mxu0 0.0
    %960 = vmatpush1.xpose.msra.mxu0 0.0
    %961 = vmatprep.subr.mxu0 0.0
    %962 = vmatpush1.xpose.msra.mxu0 0.0
    %963 = vmatprep.subr.mxu0 0.0
    %964 = vmatpush1.xpose.msra.mxu0 0.0
    %965 = vmatprep.subr.mxu0 0.0
    %966 = vmatpush1.xpose.msra.mxu0 0.0
    %967 = vmatprep.subr.mxu0 0.0
    %968 = vmatpush1.xpose.msra.mxu0 0.0
    %969 = vmatprep.subr.mxu0 0.0
    %970 = vmatpush1.xpose.msra.mxu0 0.0
    %971 = vmatprep.subr.mxu0 0.0
    %972 = vmatpush1.xpose.msra.mxu0 0.0
    %973 = vmatprep.subr.mxu0 0.0
    %974 = vmatpush1.xpose.msra.mxu0 0.0
    %975 = vmatprep.subr.mxu0 0.0
    %976 = vmatpush1.xpose.msra.mxu0 0.0
    %977 = vmatprep.subr.mxu0 0.0
    %978 = vmatpush1.xpose.msra.mxu0 0.0
    %979 = vmatprep.subr.mxu0 0.0
    %980 = vmatpush1.xpose.msra.mxu0 0.0
    %981 = vmatprep.subr.mxu0 0.0
    %982 = vmatpush1.xpose.msra.mxu0 0.0
    %983 = vmatprep.subr.mxu0 0.0
    %984 = vmatpush1.xpose.msra.mxu0 0.0
    %985 = vmatprep.subr.mxu0 0.0
    %986 = vmatpush1.xpose.msra.mxu0 0.0
    %987 = vmatprep.subr.mxu0 0.0
    %988 = vmatpush1.xpose.msra.mxu0 0.0
    %989 = vmatprep.subr.mxu0 0.0
    %990 = vmatpush1.xpose.msra.mxu0 0.0
    %991 = vmatprep.subr.mxu0 0.0
    %992 = vmatpush1.xpose.msra.mxu0 0.0
    %993 = vmatprep.subr.mxu0 0.0
    %994 = vmatpush1.xpose.msra.mxu0 0.0
    %995 = vmatprep.subr.mxu0 0.0
    %996 = vmatpush1.xpose.msra.mxu0 0.0
    %997 = vmatprep.subr.mxu0 0.0
    %998 = vmatpush1.xpose.msra.mxu0 0.0
    %999 = vmatprep.subr.mxu0 0.0
    %1000 = vmatpush1.xpose.msra.mxu0 0.0
    %1001 = vmatprep.subr.mxu0 0.0
    %1002 = vmatpush1.xpose.msra.mxu0 0.0
    %1003 = vmatprep.subr.mxu0 0.0
    %1004 = vmatpush1.xpose.msra.mxu0 0.0
    %1005 = vmatprep.subr.mxu0 0.0
    %1006 = vmatpush1.xpose.msra.mxu0 0.0
    %1007 = vmatprep.subr.mxu0 0.0
    %1008 = vmatpush1.xpose.msra.mxu0 0.0
    %1009 = vmatprep.subr.mxu0 0.0
    %1010 = vmatpush1.xpose.msra.mxu0 0.0
    %1011 = vmatprep.subr.mxu0 0.0
    %1012 = vmatpush1.xpose.msra.mxu0 0.0
    %1013 = vmatprep.subr.mxu0 0.0
    %1014 = vmatpush1.xpose.msra.mxu0 0.0
    %1015 = vmatprep.subr.mxu0 0.0
    %1016 = vmatpush1.xpose.msra.mxu0 0.0
    %1017 = vmatprep.mubr.f32.mxu0 0.0
    %1018 = vmatmul.mubr.f32.gmra.mrb[0].mxu0 %v949
    %v1019 = vpop.f32.mrb[0].mxu0
    %v1020 = vadd.f32 0.0, %v1019
    %v1021 = vpop.f32.mrb[0].mxu0
    %1022 = vdwg.mxu0
    %v1023 = vsel %vm200, -1e+09, %v942
    %v1024 = vsel %vm201, -1e+09, %v1020
    %v1025 = vsel %vm205, %v1023, -inf
    %1026 = vmax.xlane.f32.xlu0 %v1025
    %v1027 = vpop.xlane.xlu0 %1026
    %v1028 = vsel %vm205, %v1024, -inf
    %1029 = vmax.xlane.f32.xlu0 %v1028
    %v1030 = vpop.xlane.xlu0 %1029
    %v1031 = vsub.f32 %v1023, %v1027
    %v1032 = vsub.f32 %v1024, %v1030
    %v1033 = vmul.f32 %v1031, 1.442695
    %v1034 = vpow.pop %v1033
    %v1035 = vmul.f32 %v1032, 1.442695
    %v1036 = vpow.pop %v1035
    %v1037 = vsel %vm205, %v1034, 0.0
    %1038 = vadd.xlane.f32.xlu0 %v1037
    %v1039 = vpop.xlane.xlu0 %1038
    %v1040 = vsel %vm205, %v1036, 0.0
    %1041 = vadd.xlane.f32.xlu0 %v1040
    %v1042 = vpop.xlane.xlu0 %1041
    %v1043 = vrcp.pop %v1039
    %v1044 = vrcp.pop %v1042
    %v1045 = vmul.f32 %v1034, %v1043
    %v1046 = vmul.f32 %v1036, %v1044
    %1047 = vrot.lane.b32.xlu0 %v180, 48
    %v1048 = vpop.permute.xlu0 %1047
    %v1051 = vsel %vm205, %v1045, 0
    %1053 = vmatprep.subr.mxu0 0.0
    %1054 = vmatpush1.msra.mxu0 %v1048
    %1055 = vmatprep.subr.mxu0 0.0
    %1056 = vmatpush1.msra.mxu0 0.0
    %1057 = vmatprep.subr.mxu0 0.0
    %1058 = vmatpush1.msra.mxu0 0.0
    %1059 = vmatprep.subr.mxu0 0.0
    %1060 = vmatpush1.msra.mxu0 0.0
    %1061 = vmatprep.subr.mxu0 0.0
    %1062 = vmatpush1.msra.mxu0 0.0
    %1063 = vmatprep.subr.mxu0 0.0
    %1064 = vmatpush1.msra.mxu0 0.0
    %1065 = vmatprep.subr.mxu0 0.0
    %1066 = vmatpush1.msra.mxu0 0.0
    %1067 = vmatprep.subr.mxu0 0.0
    %1068 = vmatpush1.msra.mxu0 0.0
    %1069 = vmatprep.subr.mxu0 0.0
    %1070 = vmatpush1.msra.mxu0 0.0
    %1071 = vmatprep.subr.mxu0 0.0
    %1072 = vmatpush1.msra.mxu0 0.0
    %1073 = vmatprep.subr.mxu0 0.0
    %1074 = vmatpush1.msra.mxu0 0.0
    %1075 = vmatprep.subr.mxu0 0.0
    %1076 = vmatpush1.msra.mxu0 0.0
    %1077 = vmatprep.subr.mxu0 0.0
    %1078 = vmatpush1.msra.mxu0 0.0
    %1079 = vmatprep.subr.mxu0 0.0
    %1080 = vmatpush1.msra.mxu0 0.0
    %1081 = vmatprep.subr.mxu0 0.0
    %1082 = vmatpush1.msra.mxu0 0.0
    %1083 = vmatprep.subr.mxu0 0.0
    %1084 = vmatpush1.msra.mxu0 0.0
    %1085 = vmatprep.subr.mxu0 0.0
    %1086 = vmatpush1.msra.mxu0 0.0
    %1087 = vmatprep.subr.mxu0 0.0
    %1088 = vmatpush1.msra.mxu0 0.0
    %1089 = vmatprep.subr.mxu0 0.0
    %1090 = vmatpush1.msra.mxu0 0.0
    %1091 = vmatprep.subr.mxu0 0.0
    %1092 = vmatpush1.msra.mxu0 0.0
    %1093 = vmatprep.subr.mxu0 0.0
    %1094 = vmatpush1.msra.mxu0 0.0
    %1095 = vmatprep.subr.mxu0 0.0
    %1096 = vmatpush1.msra.mxu0 0.0
    %1097 = vmatprep.subr.mxu0 0.0
    %1098 = vmatpush1.msra.mxu0 0.0
    %1099 = vmatprep.subr.mxu0 0.0
    %1100 = vmatpush1.msra.mxu0 0.0
    %1101 = vmatprep.subr.mxu0 0.0
    %1102 = vmatpush1.msra.mxu0 0.0
    %1103 = vmatprep.subr.mxu0 0.0
    %1104 = vmatpush1.msra.mxu0 0.0
    %1105 = vmatprep.subr.mxu0 0.0
    %1106 = vmatpush1.msra.mxu0 0.0
    %1107 = vmatprep.subr.mxu0 0.0
    %1108 = vmatpush1.msra.mxu0 0.0
    %1109 = vmatprep.subr.mxu0 0.0
    %1110 = vmatpush1.msra.mxu0 0.0
    %1111 = vmatprep.subr.mxu0 0.0
    %1112 = vmatpush1.msra.mxu0 0.0
    %1113 = vmatprep.subr.mxu0 0.0
    %1114 = vmatpush1.msra.mxu0 0.0
    %1115 = vmatprep.subr.mxu0 0.0
    %1116 = vmatpush1.msra.mxu0 0.0
    %1117 = vmatprep.mubr.f32.mxu0 0.0
    %1118 = vmatmul.mubr.f32.gmra.mrb[0].mxu0 %v1051
    %v1119 = vpop.f32.mrb[0].mxu0
    %v1120 = vadd.f32 0.0, %v1119
    %v1121 = vpop.f32.mrb[0].mxu0
    %1122 = vdwg.mxu0
    %1123 = vrot.lane.b32.xlu0 %v185, 48
    %v1124 = vpop.permute.xlu0 %1123
    %v1127 = vsel %vm205, %v1046, 0
    %1129 = vmatprep.subr.mxu0 0.0
    %1130 = vmatpush1.msra.mxu0 %v1124
    %1131 = vmatprep.subr.mxu0 0.0
    %1132 = vmatpush1.msra.mxu0 0.0
    %1133 = vmatprep.subr.mxu0 0.0
    %1134 = vmatpush1.msra.mxu0 0.0
    %1135 = vmatprep.subr.mxu0 0.0
    %1136 = vmatpush1.msra.mxu0 0.0
    %1137 = vmatprep.subr.mxu0 0.0
    %1138 = vmatpush1.msra.mxu0 0.0
    %1139 = vmatprep.subr.mxu0 0.0
    %1140 = vmatpush1.msra.mxu0 0.0
    %1141 = vmatprep.subr.mxu0 0.0
    %1142 = vmatpush1.msra.mxu0 0.0
    %1143 = vmatprep.subr.mxu0 0.0
    %1144 = vmatpush1.msra.mxu0 0.0
    %1145 = vmatprep.subr.mxu0 0.0
    %1146 = vmatpush1.msra.mxu0 0.0
    %1147 = vmatprep.subr.mxu0 0.0
    %1148 = vmatpush1.msra.mxu0 0.0
    %1149 = vmatprep.subr.mxu0 0.0
    %1150 = vmatpush1.msra.mxu0 0.0
    %1151 = vmatprep.subr.mxu0 0.0
    %1152 = vmatpush1.msra.mxu0 0.0
    %1153 = vmatprep.subr.mxu0 0.0
    %1154 = vmatpush1.msra.mxu0 0.0
    %1155 = vmatprep.subr.mxu0 0.0
    %1156 = vmatpush1.msra.mxu0 0.0
    %1157 = vmatprep.subr.mxu0 0.0
    %1158 = vmatpush1.msra.mxu0 0.0
    %1159 = vmatprep.subr.mxu0 0.0
    %1160 = vmatpush1.msra.mxu0 0.0
    %1161 = vmatprep.subr.mxu0 0.0
    %1162 = vmatpush1.msra.mxu0 0.0
    %1163 = vmatprep.subr.mxu0 0.0
    %1164 = vmatpush1.msra.mxu0 0.0
    %1165 = vmatprep.subr.mxu0 0.0
    %1166 = vmatpush1.msra.mxu0 0.0
    %1167 = vmatprep.subr.mxu0 0.0
    %1168 = vmatpush1.msra.mxu0 0.0
    %1169 = vmatprep.subr.mxu0 0.0
    %1170 = vmatpush1.msra.mxu0 0.0
    %1171 = vmatprep.subr.mxu0 0.0
    %1172 = vmatpush1.msra.mxu0 0.0
    %1173 = vmatprep.subr.mxu0 0.0
    %1174 = vmatpush1.msra.mxu0 0.0
    %1175 = vmatprep.subr.mxu0 0.0
    %1176 = vmatpush1.msra.mxu0 0.0
    %1177 = vmatprep.subr.mxu0 0.0
    %1178 = vmatpush1.msra.mxu0 0.0
    %1179 = vmatprep.subr.mxu0 0.0
    %1180 = vmatpush1.msra.mxu0 0.0
    %1181 = vmatprep.subr.mxu0 0.0
    %1182 = vmatpush1.msra.mxu0 0.0
    %1183 = vmatprep.subr.mxu0 0.0
    %1184 = vmatpush1.msra.mxu0 0.0
    %1185 = vmatprep.subr.mxu0 0.0
    %1186 = vmatpush1.msra.mxu0 0.0
    %1187 = vmatprep.subr.mxu0 0.0
    %1188 = vmatpush1.msra.mxu0 0.0
    %1189 = vmatprep.subr.mxu0 0.0
    %1190 = vmatpush1.msra.mxu0 0.0
    %1191 = vmatprep.subr.mxu0 0.0
    %1192 = vmatpush1.msra.mxu0 0.0
    %1193 = vmatprep.mubr.f32.mxu0 0.0
    %1194 = vmatmul.mubr.f32.gmra.mrb[0].mxu0 %v1127
    %v1195 = vpop.f32.mrb[0].mxu0
    %v1196 = vadd.f32 0.0, %v1195
    %v1197 = vpop.f32.mrb[0].mxu0
    %1198 = vdwg.mxu0
    %1199 = vrot.lane.b32.xlu0 %v188, 104
    %v1200 = vpop.permute.xlu0 %1199
    %1201 = vrot.lane.b32.xlu0 %v180, 72
    %v1202 = vpop.permute.xlu0 %1201
    %v1203 = vsel %vm205, %v1200, 0
    %v1205 = vsel %vm205, %v1202, 0
    %1207 = vmatprep.subr.mxu0 0.0
    %1208 = vmatpush1.xpose.msra.mxu0 %v1205
    %1209 = vmatprep.subr.mxu0 0.0
    %1210 = vmatpush1.xpose.msra.mxu0 0.0
    %1211 = vmatprep.subr.mxu0 0.0
    %1212 = vmatpush1.xpose.msra.mxu0 0.0
    %1213 = vmatprep.subr.mxu0 0.0
    %1214 = vmatpush1.xpose.msra.mxu0 0.0
    %1215 = vmatprep.subr.mxu0 0.0
    %1216 = vmatpush1.xpose.msra.mxu0 0.0
    %1217 = vmatprep.subr.mxu0 0.0
    %1218 = vmatpush1.xpose.msra.mxu0 0.0
    %1219 = vmatprep.subr.mxu0 0.0
    %1220 = vmatpush1.xpose.msra.mxu0 0.0
    %1221 = vmatprep.subr.mxu0 0.0
    %1222 = vmatpush1.xpose.msra.mxu0 0.0
    %1223 = vmatprep.subr.mxu0 0.0
    %1224 = vmatpush1.xpose.msra.mxu0 0.0
    %1225 = vmatprep.subr.mxu0 0.0
    %1226 = vmatpush1.xpose.msra.mxu0 0.0
    %1227 = vmatprep.subr.mxu0 0.0
    %1228 = vmatpush1.xpose.msra.mxu0 0.0
    %1229 = vmatprep.subr.mxu0 0.0
    %1230 = vmatpush1.xpose.msra.mxu0 0.0
    %1231 = vmatprep.subr.mxu0 0.0
    %1232 = vmatpush1.xpose.msra.mxu0 0.0
    %1233 = vmatprep.subr.mxu0 0.0
    %1234 = vmatpush1.xpose.msra.mxu0 0.0
    %1235 = vmatprep.subr.mxu0 0.0
    %1236 = vmatpush1.xpose.msra.mxu0 0.0
    %1237 = vmatprep.subr.mxu0 0.0
    %1238 = vmatpush1.xpose.msra.mxu0 0.0
    %1239 = vmatprep.subr.mxu0 0.0
    %1240 = vmatpush1.xpose.msra.mxu0 0.0
    %1241 = vmatprep.subr.mxu0 0.0
    %1242 = vmatpush1.xpose.msra.mxu0 0.0
    %1243 = vmatprep.subr.mxu0 0.0
    %1244 = vmatpush1.xpose.msra.mxu0 0.0
    %1245 = vmatprep.subr.mxu0 0.0
    %1246 = vmatpush1.xpose.msra.mxu0 0.0
    %1247 = vmatprep.subr.mxu0 0.0
    %1248 = vmatpush1.xpose.msra.mxu0 0.0
    %1249 = vmatprep.subr.mxu0 0.0
    %1250 = vmatpush1.xpose.msra.mxu0 0.0
    %1251 = vmatprep.subr.mxu0 0.0
    %1252 = vmatpush1.xpose.msra.mxu0 0.0
    %1253 = vmatprep.subr.mxu0 0.0
    %1254 = vmatpush1.xpose.msra.mxu0 0.0
    %1255 = vmatprep.subr.mxu0 0.0
    %1256 = vmatpush1.xpose.msra.mxu0 0.0
    %1257 = vmatprep.subr.mxu0 0.0
    %1258 = vmatpush1.xpose.msra.mxu0 0.0
    %1259 = vmatprep.subr.mxu0 0.0
    %1260 = vmatpush1.xpose.msra.mxu0 0.0
    %1261 = vmatprep.subr.mxu0 0.0
    %1262 = vmatpush1.xpose.msra.mxu0 0.0
    %1263 = vmatprep.subr.mxu0 0.0
    %1264 = vmatpush1.xpose.msra.mxu0 0.0
    %1265 = vmatprep.subr.mxu0 0.0
    %1266 = vmatpush1.xpose.msra.mxu0 0.0
    %1267 = vmatprep.subr.mxu0 0.0
    %1268 = vmatpush1.xpose.msra.mxu0 0.0
    %1269 = vmatprep.subr.mxu0 0.0
    %1270 = vmatpush1.xpose.msra.mxu0 0.0
    %1271 = vmatprep.mubr.f32.mxu0 0.0
    %1272 = vmatmul.mubr.f32.gmra.mrb[0].mxu0 %v1203
    %v1273 = vpop.f32.mrb[0].mxu0
    %v1274 = vadd.f32 0.0, %v1273
    %v1275 = vpop.f32.mrb[0].mxu0
    %1276 = vdwg.mxu0
    %1277 = vrot.lane.b32.xlu0 %v189, 104
    %v1278 = vpop.permute.xlu0 %1277
    %1279 = vrot.lane.b32.xlu0 %v185, 72
    %v1280 = vpop.permute.xlu0 %1279
    %v1281 = vsel %vm205, %v1278, 0
    %v1283 = vsel %vm205, %v1280, 0
    %1285 = vmatprep.subr.mxu0 0.0
    %1286 = vmatpush1.xpose.msra.mxu0 %v1283
    %1287 = vmatprep.subr.mxu0 0.0
    %1288 = vmatpush1.xpose.msra.mxu0 0.0
    %1289 = vmatprep.subr.mxu0 0.0
    %1290 = vmatpush1.xpose.msra.mxu0 0.0
    %1291 = vmatprep.subr.mxu0 0.0
    %1292 = vmatpush1.xpose.msra.mxu0 0.0
    %1293 = vmatprep.subr.mxu0 0.0
    %1294 = vmatpush1.xpose.msra.mxu0 0.0
    %1295 = vmatprep.subr.mxu0 0.0
    %1296 = vmatpush1.xpose.msra.mxu0 0.0
    %1297 = vmatprep.subr.mxu0 0.0
    %1298 = vmatpush1.xpose.msra.mxu0 0.0
    %1299 = vmatprep.subr.mxu0 0.0
    %1300 = vmatpush1.xpose.msra.mxu0 0.0
    %1301 = vmatprep.subr.mxu0 0.0
    %1302 = vmatpush1.xpose.msra.mxu0 0.0
    %1303 = vmatprep.subr.mxu0 0.0
    %1304 = vmatpush1.xpose.msra.mxu0 0.0
    %1305 = vmatprep.subr.mxu0 0.0
    %1306 = vmatpush1.xpose.msra.mxu0 0.0
    %1307 = vmatprep.subr.mxu0 0.0
    %1308 = vmatpush1.xpose.msra.mxu0 0.0
    %1309 = vmatprep.subr.mxu0 0.0
    %1310 = vmatpush1.xpose.msra.mxu0 0.0
    %1311 = vmatprep.subr.mxu0 0.0
    %1312 = vmatpush1.xpose.msra.mxu0 0.0
    %1313 = vmatprep.subr.mxu0 0.0
    %1314 = vmatpush1.xpose.msra.mxu0 0.0
    %1315 = vmatprep.subr.mxu0 0.0
    %1316 = vmatpush1.xpose.msra.mxu0 0.0
    %1317 = vmatprep.subr.mxu0 0.0
    %1318 = vmatpush1.xpose.msra.mxu0 0.0
    %1319 = vmatprep.subr.mxu0 0.0
    %1320 = vmatpush1.xpose.msra.mxu0 0.0
    %1321 = vmatprep.subr.mxu0 0.0
    %1322 = vmatpush1.xpose.msra.mxu0 0.0
    %1323 = vmatprep.subr.mxu0 0.0
    %1324 = vmatpush1.xpose.msra.mxu0 0.0
    %1325 = vmatprep.subr.mxu0 0.0
    %1326 = vmatpush1.xpose.msra.mxu0 0.0
    %1327 = vmatprep.subr.mxu0 0.0
    %1328 = vmatpush1.xpose.msra.mxu0 0.0
    %1329 = vmatprep.subr.mxu0 0.0
    %1330 = vmatpush1.xpose.msra.mxu0 0.0
    %1331 = vmatprep.subr.mxu0 0.0
    %1332 = vmatpush1.xpose.msra.mxu0 0.0
    %1333 = vmatprep.subr.mxu0 0.0
    %1334 = vmatpush1.xpose.msra.mxu0 0.0
    %1335 = vmatprep.subr.mxu0 0.0
    %1336 = vmatpush1.xpose.msra.mxu0 0.0
    %1337 = vmatprep.subr.mxu0 0.0
    %1338 = vmatpush1.xpose.msra.mxu0 0.0
    %1339 = vmatprep.subr.mxu0 0.0
    %1340 = vmatpush1.xpose.msra.mxu0 0.0
    %1341 = vmatprep.subr.mxu0 0.0
    %1342 = vmatpush1.xpose.msra.mxu0 0.0
    %1343 = vmatprep.subr.mxu0 0.0
    %1344 = vmatpush1.xpose.msra.mxu0 0.0
    %1345 = vmatprep.subr.mxu0 0.0
    %1346 = vmatpush1.xpose.msra.mxu0 0.0
    %1347 = vmatprep.subr.mxu0 0.0
    %1348 = vmatpush1.xpose.msra.mxu0 0.0
    %1349 = vmatprep.mubr.f32.mxu0 0.0
    %1350 = vmatmul.mubr.f32.gmra.mrb[0].mxu0 %v1281
    %v1351 = vpop.f32.mrb[0].mxu0
    %v1352 = vadd.f32 0.0, %v1351
    %v1353 = vpop.f32.mrb[0].mxu0
    %1354 = vdwg.mxu0
    %v1355 = vsel %vm200, -1e+09, %v1274
    %v1356 = vsel %vm201, -1e+09, %v1352
    %v1357 = vsel %vm205, %v1355, -inf
    %1358 = vmax.xlane.f32.xlu0 %v1357
    %v1359 = vpop.xlane.xlu0 %1358
    %v1360 = vsel %vm205, %v1356, -inf
    %1361 = vmax.xlane.f32.xlu0 %v1360
    %v1362 = vpop.xlane.xlu0 %1361
    %v1363 = vsub.f32 %v1355, %v1359
    %v1364 = vsub.f32 %v1356, %v1362
    %v1365 = vmul.f32 %v1363, 1.442695
    %v1366 = vpow.pop %v1365
    %v1367 = vmul.f32 %v1364, 1.442695
    %v1368 = vpow.pop %v1367
    %v1369 = vsel %vm205, %v1366, 0.0
    %1370 = vadd.xlane.f32.xlu0 %v1369
    %v1371 = vpop.xlane.xlu0 %1370
    %v1372 = vsel %vm205, %v1368, 0.0
    %1373 = vadd.xlane.f32.xlu0 %v1372
    %v1374 = vpop.xlane.xlu0 %1373
    %v1375 = vrcp.pop %v1371
    %v1376 = vrcp.pop %v1374
    %v1377 = vmul.f32 %v1366, %v1375
    %v1378 = vmul.f32 %v1368, %v1376
    %1379 = vrot.lane.b32.xlu0 %v180, 40
    %v1380 = vpop.permute.xlu0 %1379
    %v1383 = vsel %vm205, %v1377, 0
    %1385 = vmatprep.subr.mxu0 0.0
    %1386 = vmatpush1.msra.mxu0 %v1380
    %1387 = vmatprep.subr.mxu0 0.0
    %1388 = vmatpush1.msra.mxu0 0.0
    %1389 = vmatprep.subr.mxu0 0.0
    %1390 = vmatpush1.msra.mxu0 0.0
    %1391 = vmatprep.subr.mxu0 0.0
    %1392 = vmatpush1.msra.mxu0 0.0
    %1393 = vmatprep.subr.mxu0 0.0
    %1394 = vmatpush1.msra.mxu0 0.0
    %1395 = vmatprep.subr.mxu0 0.0
    %1396 = vmatpush1.msra.mxu0 0.0
    %1397 = vmatprep.subr.mxu0 0.0
    %1398 = vmatpush1.msra.mxu0 0.0
    %1399 = vmatprep.subr.mxu0 0.0
    %1400 = vmatpush1.msra.mxu0 0.0
    %1401 = vmatprep.subr.mxu0 0.0
    %1402 = vmatpush1.msra.mxu0 0.0
    %1403 = vmatprep.subr.mxu0 0.0
    %1404 = vmatpush1.msra.mxu0 0.0
    %1405 = vmatprep.subr.mxu0 0.0
    %1406 = vmatpush1.msra.mxu0 0.0
    %1407 = vmatprep.subr.mxu0 0.0
    %1408 = vmatpush1.msra.mxu0 0.0
    %1409 = vmatprep.subr.mxu0 0.0
    %1410 = vmatpush1.msra.mxu0 0.0
    %1411 = vmatprep.subr.mxu0 0.0
    %1412 = vmatpush1.msra.mxu0 0.0
    %1413 = vmatprep.subr.mxu0 0.0
    %1414 = vmatpush1.msra.mxu0 0.0
    %1415 = vmatprep.subr.mxu0 0.0
    %1416 = vmatpush1.msra.mxu0 0.0
    %1417 = vmatprep.subr.mxu0 0.0
    %1418 = vmatpush1.msra.mxu0 0.0
    %1419 = vmatprep.subr.mxu0 0.0
    %1420 = vmatpush1.msra.mxu0 0.0
    %1421 = vmatprep.subr.mxu0 0.0
    %1422 = vmatpush1.msra.mxu0 0.0
    %1423 = vmatprep.subr.mxu0 0.0
    %1424 = vmatpush1.msra.mxu0 0.0
    %1425 = vmatprep.subr.mxu0 0.0
    %1426 = vmatpush1.msra.mxu0 0.0
    %1427 = vmatprep.subr.mxu0 0.0
    %1428 = vmatpush1.msra.mxu0 0.0
    %1429 = vmatprep.subr.mxu0 0.0
    %1430 = vmatpush1.msra.mxu0 0.0
    %1431 = vmatprep.subr.mxu0 0.0
    %1432 = vmatpush1.msra.mxu0 0.0
    %1433 = vmatprep.subr.mxu0 0.0
    %1434 = vmatpush1.msra.mxu0 0.0
    %1435 = vmatprep.subr.mxu0 0.0
    %1436 = vmatpush1.msra.mxu0 0.0
    %1437 = vmatprep.subr.mxu0 0.0
    %1438 = vmatpush1.msra.mxu0 0.0
    %1439 = vmatprep.subr.mxu0 0.0
    %1440 = vmatpush1.msra.mxu0 0.0
    %1441 = vmatprep.subr.mxu0 0.0
    %1442 = vmatpush1.msra.mxu0 0.0
    %1443 = vmatprep.subr.mxu0 0.0
    %1444 = vmatpush1.msra.mxu0 0.0
    %1445 = vmatprep.subr.mxu0 0.0
    %1446 = vmatpush1.msra.mxu0 0.0
    %1447 = vmatprep.subr.mxu0 0.0
    %1448 = vmatpush1.msra.mxu0 0.0
    %1449 = vmatprep.mubr.f32.mxu0 0.0
    %1450 = vmatmul.mubr.f32.gmra.mrb[0].mxu0 %v1383
    %v1451 = vpop.f32.mrb[0].mxu0
    %v1452 = vadd.f32 0.0, %v1451
    %v1453 = vpop.f32.mrb[0].mxu0
    %1454 = vdwg.mxu0
    %1455 = vrot.lane.b32.xlu0 %v185, 40
    %v1456 = vpop.permute.xlu0 %1455
    %v1459 = vsel %vm205, %v1378, 0
    %1461 = vmatprep.subr.mxu0 0.0
    %1462 = vmatpush1.msra.mxu0 %v1456
    %1463 = vmatprep.subr.mxu0 0.0
    %1464 = vmatpush1.msra.mxu0 0.0
    %1465 = vmatprep.subr.mxu0 0.0
    %1466 = vmatpush1.msra.mxu0 0.0
    %1467 = vmatprep.subr.mxu0 0.0
    %1468 = vmatpush1.msra.mxu0 0.0
    %1469 = vmatprep.subr.mxu0 0.0
    %1470 = vmatpush1.msra.mxu0 0.0
    %1471 = vmatprep.subr.mxu0 0.0
    %1472 = vmatpush1.msra.mxu0 0.0
    %1473 = vmatprep.subr.mxu0 0.0
    %1474 = vmatpush1.msra.mxu0 0.0
    %1475 = vmatprep.subr.mxu0 0.0
    %1476 = vmatpush1.msra.mxu0 0.0
    %1477 = vmatprep.subr.mxu0 0.0
    %1478 = vmatpush1.msra.mxu0 0.0
    %1479 = vmatprep.subr.mxu0 0.0
    %1480 = vmatpush1.msra.mxu0 0.0
    %1481 = vmatprep.subr.mxu0 0.0
    %1482 = vmatpush1.msra.mxu0 0.0
    %1483 = vmatprep.subr.mxu0 0.0
    %1484 = vmatpush1.msra.mxu0 0.0
    %1485 = vmatprep.subr.mxu0 0.0
    %1486 = vmatpush1.msra.mxu0 0.0
    %1487 = vmatprep.subr.mxu0 0.0
    %1488 = vmatpush1.msra.mxu0 0.0
    %1489 = vmatprep.subr.mxu0 0.0
    %1490 = vmatpush1.msra.mxu0 0.0
    %1491 = vmatprep.subr.mxu0 0.0
    %1492 = vmatpush1.msra.mxu0 0.0
    %1493 = vmatprep.subr.mxu0 0.0
    %1494 = vmatpush1.msra.mxu0 0.0
    %1495 = vmatprep.subr.mxu0 0.0
    %1496 = vmatpush1.msra.mxu0 0.0
    %1497 = vmatprep.subr.mxu0 0.0
    %1498 = vmatpush1.msra.mxu0 0.0
    %1499 = vmatprep.subr.mxu0 0.0
    %1500 = vmatpush1.msra.mxu0 0.0
    %1501 = vmatprep.subr.mxu0 0.0
    %1502 = vmatpush1.msra.mxu0 0.0
    %1503 = vmatprep.subr.mxu0 0.0
    %1504 = vmatpush1.msra.mxu0 0.0
    %1505 = vmatprep.subr.mxu0 0.0
    %1506 = vmatpush1.msra.mxu0 0.0
    %1507 = vmatprep.subr.mxu0 0.0
    %1508 = vmatpush1.msra.mxu0 0.0
    %1509 = vmatprep.subr.mxu0 0.0
    %1510 = vmatpush1.msra.mxu0 0.0
    %1511 = vmatprep.subr.mxu0 0.0
    %1512 = vmatpush1.msra.mxu0 0.0
    %1513 = vmatprep.subr.mxu0 0.0
    %1514 = vmatpush1.msra.mxu0 0.0
    %1515 = vmatprep.subr.mxu0 0.0
    %1516 = vmatpush1.msra.mxu0 0.0
    %1517 = vmatprep.subr.mxu0 0.0
    %1518 = vmatpush1.msra.mxu0 0.0
    %1519 = vmatprep.subr.mxu0 0.0
    %1520 = vmatpush1.msra.mxu0 0.0
    %1521 = vmatprep.subr.mxu0 0.0
    %1522 = vmatpush1.msra.mxu0 0.0
    %1523 = vmatprep.subr.mxu0 0.0
    %1524 = vmatpush1.msra.mxu0 0.0
    %1525 = vmatprep.mubr.f32.mxu0 0.0
    %1526 = vmatmul.mubr.f32.gmra.mrb[0].mxu0 %v1459
    %v1527 = vpop.f32.mrb[0].mxu0
    %v1528 = vadd.f32 0.0, %v1527
    %v1529 = vpop.f32.mrb[0].mxu0
    %1530 = vdwg.mxu0
    %1533 = vrot.lane.b32.xlu0 %v788, 8
    %v1534 = vpop.permute.xlu0 %1533
    %1535 = vrot.lane.b32.xlu0 %v864, 8
    %v1536 = vpop.permute.xlu0 %1535
    %1541 = vrot.lane.b32.xlu0 %v1120, 16
    %v1542 = vpop.permute.xlu0 %1541
    %1543 = vrot.lane.b32.xlu0 %v1196, 16
    %v1544 = vpop.permute.xlu0 %1543
    %1549 = vrot.lane.b32.xlu0 %v1452, 24
    %v1550 = vpop.permute.xlu0 %1549
    %1551 = vrot.lane.b32.xlu0 %v1528, 24
    %v1552 = vpop.permute.xlu0 %1551
    %v1555 = vsel %vm205, %v456, %v1534
    %v1556 = vsel %vm205, %v532, %v1536
    %vm1557 = vcmask 130048
    %v1558 = vsel %vm1557, %v1555, %v1542
    %v1559 = vsel %vm1557, %v1556, %v1544
    %vm1560 = vcmask 195584
    %v1561 = vsel %vm1560, %v1558, %v1550
    %v1562 = vsel %vm1560, %v1559, %v1552
    %v1563 = vld [vmem:[#allocation10] sm:$0x7]
    %v1564 = vld [vmem:[#allocation8] sm:$0xff]
    %v1565 = vld [vmem:[#allocation8 + $0x8] sm:$0xff]
    %v1566 = vld [vmem:[#allocation8 + $0x10] sm:$0xff]
    %v1567 = vld [vmem:[#allocation8 + $0x18] sm:$0xff]
    %v1568 = vlaneseq
    %v1569 = vshrl.u32 %v1568, 7
    %v1570 = vsub.s32 0, %v1569
    %v1571 = vrot.slane %v1563, %v1570
    %v1573 = vsel %vm106, %v1561, 0
    %v1576 = vsel %vm106, %v1562, 0
    %1578 = vmatprep.subr.mxu0 0.0
    %1579 = vmatpush1.msra.mxu0 %v1564
    %1580 = vmatprep.subr.mxu0 0.0
    %1581 = vmatpush1.msra.mxu0 %v1565
    %1582 = vmatprep.subr.mxu0 0.0
    %1583 = vmatpush1.msra.mxu0 %v1566
    %1584 = vmatprep.subr.mxu0 0.0
    %1585 = vmatpush1.msra.mxu0 %v1567
    %1586 = vmatprep.subr.mxu0 0.0
    %1587 = vmatpush1.msra.mxu0 0.0
    %1588 = vmatprep.subr.mxu0 0.0
    %1589 = vmatpush1.msra.mxu0 0.0
    %1590 = vmatprep.subr.mxu0 0.0
    %1591 = vmatpush1.msra.mxu0 0.0
    %1592 = vmatprep.subr.mxu0 0.0
    %1593 = vmatpush1.msra.mxu0 0.0
    %1594 = vmatprep.subr.mxu0 0.0
    %1595 = vmatpush1.msra.mxu0 0.0
    %1596 = vmatprep.subr.mxu0 0.0
    %1597 = vmatpush1.msra.mxu0 0.0
    %1598 = vmatprep.subr.mxu0 0.0
    %1599 = vmatpush1.msra.mxu0 0.0
    %1600 = vmatprep.subr.mxu0 0.0
    %1601 = vmatpush1.msra.mxu0 0.0
    %1602 = vmatprep.subr.mxu0 0.0
    %1603 = vmatpush1.msra.mxu0 0.0
    %1604 = vmatprep.subr.mxu0 0.0
    %1605 = vmatpush1.msra.mxu0 0.0
    %1606 = vmatprep.subr.mxu0 0.0
    %1607 = vmatpush1.msra.mxu0 0.0
    %1608 = vmatprep.subr.mxu0 0.0
    %1609 = vmatpush1.msra.mxu0 0.0
    %1610 = vmatprep.subr.mxu0 0.0
    %1611 = vmatpush1.msra.mxu0 0.0
    %1612 = vmatprep.subr.mxu0 0.0
    %1613 = vmatpush1.msra.mxu0 0.0
    %1614 = vmatprep.subr.mxu0 0.0
    %1615 = vmatpush1.msra.mxu0 0.0
    %1616 = vmatprep.subr.mxu0 0.0
    %1617 = vmatpush1.msra.mxu0 0.0
    %1618 = vmatprep.subr.mxu0 0.0
    %1619 = vmatpush1.msra.mxu0 0.0
    %1620 = vmatprep.subr.mxu0 0.0
    %1621 = vmatpush1.msra.mxu0 0.0
    %1622 = vmatprep.subr.mxu0 0.0
    %1623 = vmatpush1.msra.mxu0 0.0
    %1624 = vmatprep.subr.mxu0 0.0
    %1625 = vmatpush1.msra.mxu0 0.0
    %1626 = vmatprep.subr.mxu0 0.0
    %1627 = vmatpush1.msra.mxu0 0.0
    %1628 = vmatprep.subr.mxu0 0.0
    %1629 = vmatpush1.msra.mxu0 0.0
    %1630 = vmatprep.subr.mxu0 0.0
    %1631 = vmatpush1.msra.mxu0 0.0
    %1632 = vmatprep.subr.mxu0 0.0
    %1633 = vmatpush1.msra.mxu0 0.0
    %1634 = vmatprep.subr.mxu0 0.0
    %1635 = vmatpush1.msra.mxu0 0.0
    %1636 = vmatprep.subr.mxu0 0.0
    %1637 = vmatpush1.msra.mxu0 0.0
    %1638 = vmatprep.subr.mxu0 0.0
    %1639 = vmatpush1.msra.mxu0 0.0
    %1640 = vmatprep.subr.mxu0 0.0
    %1641 = vmatpush1.msra.mxu0 0.0
    %1642 = vmatprep.mubr.f32.mxu0 0.0
    %1643 = vmatmul.mubr.f32.gmra.mrb[0].mxu0 %v1573
    %v1644 = vpop.f32.mrb[0].mxu0
    %v1645 = vadd.f32 %v1571, %v1644
    %v1646 = vpop.f32.mrb[0].mxu0
    %1647 = vmatprep.mubr.f32.mxu0 0.0
    %1648 = vmatmul.mubr.f32.gmra.mrb[0].mxu0 %v1576
    %v1649 = vpop.f32.mrb[0].mxu0
    %v1650 = vadd.f32 %v1571, %v1649
    %v1651 = vpop.f32.mrb[0].mxu0
    %1652 = vdwg.mxu0
    %v1653 = vadd.f32 %v1645, %v91
    %v1654 = vadd.f32 %v1650, %v92
    %v1655 = vsel %vm106, %v1653, 0.0
    %1656 = vadd.xlane.f32.xlu0 %v1655
    %v1657 = vpop.xlane.xlu0 %1656
    %v1658 = vsel %vm106, %v1654, 0.0
    %1659 = vadd.xlane.f32.xlu0 %v1658
    %v1660 = vpop.xlane.xlu0 %1659
    %v1661 = vrcp.pop 32.0
    %v1662 = vmul.f32 %v1657, %v1661
    %v1663 = vmul.f32 %v1660, %v1661
    %v1664 = vsub.f32 %v1653, %v1662
    %v1665 = vsub.f32 %v1654, %v1663
    %v1666 = vmul.f32 %v1664, %v1664
    %v1667 = vmul.f32 %v1665, %v1665
    %v1668 = vsel %vm106, %v1666, 0.0
    %1669 = vadd.xlane.f32.xlu0 %v1668
    %v1670 = vpop.xlane.xlu0 %1669
    %v1671 = vsel %vm106, %v1667, 0.0
    %1672 = vadd.xlane.f32.xlu0 %v1671
    %v1673 = vpop.xlane.xlu0 %1672
    %v1674 = vmul.f32 %v1670, %v1661
    %v1675 = vmul.f32 %v1673, %v1661
    %v1676 = vadd.f32 %v1674, 1e-05
    %v1677 = vadd.f32 %v1675, 1e-05
    %v1678 = vrsqrt.pop %v1676
    %v1679 = vrsqrt.pop %v1677
    %v1680 = vmul.f32 %v1664, %v1678
    %v1681 = vmul.f32 %v1665, %v1679
    %v1682 = vlaneseq
    %v1683 = vshrl.u32 %v1682, 7
    %v1684 = vsub.s32 1, %v1683
    %v1685 = vrot.slane %v1563, %v1684
    %v1686 = vmul.f32 %v1680, %v1685
    %v1687 = vmul.f32 %v1681, %v1685
    %v1688 = vlaneseq
    %v1689 = vshrl.u32 %v1688, 7
    %v1690 = vsub.s32 2, %v1689
    %v1691 = vrot.slane %v1563, %v1690
    %v1692 = vadd.f32 %v1686, %v1691
    %v1693 = vadd.f32 %v1687, %v1691
    %1695 = vset.pattern.permute.xlu0 0
    %1696 = vperm.xlu0 %1695, %v93
    %v1697 = vpop.permute.xlu0 %1696
    %1700 = vset.pattern.permute.xlu0 0
    %1701 = vperm.xlu0 %1700, %v94
    %v1702 = vpop.permute.xlu0 %1701
    %v1704 = vmul.f32 %v1692, %v1697
    %v1705 = vmul.f32 %v1693, %v1702
    %v1706 = vsel %vm106, %v1704, 0.0
    %v1707 = vrot.slane %v1706, 4
    %v1708 = vadd.f32 %v1706, %v1707
    %v1709 = vrot.slane %v1708, 2
    %v1710 = vadd.f32 %v1708, %v1709
    %v1711 = vrot.slane %v1710, 1
    %v1712 = vadd.f32 %v1710, %v1711
    %v1713 = vsel %vm106, %v1705, 0.0
    %v1714 = vrot.slane %v1713, 4
    %v1715 = vadd.f32 %v1713, %v1714
    %v1716 = vrot.slane %v1715, 2
    %v1717 = vadd.f32 %v1715, %v1716
    %v1718 = vrot.slane %v1717, 1
    %v1719 = vadd.f32 %v1717, %v1718
    %vm1720 = vcmask 7168
    %v1721 = vsel %vm1720, %v93, 0.0
    %v1722 = vrot.slane %v1721, 4
    %v1723 = vadd.f32 %v1721, %v1722
    %v1724 = vrot.slane %v1723, 2
    %v1725 = vadd.f32 %v1723, %v1724
    %v1726 = vrot.slane %v1725, 1
    %v1727 = vadd.f32 %v1725, %v1726
    %v1728 = vsel %vm1720, %v94, 0.0
    %v1729 = vrot.slane %v1728, 4
    %v1730 = vadd.f32 %v1728, %v1729
    %v1731 = vrot.slane %v1730, 2
    %v1732 = vadd.f32 %v1730, %v1731
    %v1733 = vrot.slane %v1732, 1
    %v1734 = vadd.f32 %v1732, %v1733
    %v1735 = vadd.f32 %v1727, 1e-05
    %v1736 = vadd.f32 %v1734, 1e-05
    %v1737 = vrcp.pop %v1735
    %v1738 = vrcp.pop %v1736
    %1740 = vset.pattern.permute.xlu0 0
    %1741 = vperm.xlu0 %1740, %v1737
    %v1742 = vpop.permute.xlu0 %1741
    %1745 = vset.pattern.permute.xlu0 0
    %1746 = vperm.xlu0 %1745, %v1738
    %v1747 = vpop.permute.xlu0 %1746
    %v1749 = vmul.f32 %v1712, %v1742
    %v1750 = vmul.f32 %v1719, %v1747
    %v1751 = vld [vmem:[%s6] sm:$0xff]
    %v1752 = vld [vmem:[%s6 + $0x8] sm:$0xff]
    %v1753 = vld [vmem:[%s6 + $0x10] sm:$0xff]
    %v1754 = vld [vmem:[%s6 + $0x18] sm:$0xff]
    %v1755 = vld [vmem:[%s6 + $0x20] sm:$0x1]
    %v1756 = vlaneseq
    %v1757 = vshrl.u32 %v1756, 7
    %v1758 = vsub.s32 0, %v1757
    %v1759 = vrot.slane %v1755, %v1758
    %vm1762 = vcmask 1041409
    %v1763 = vsel %vm1762, %v1750, %v1749
    %v1764 = vsel %vm106, %v1763, 0
    %1766 = vmatprep.subr.mxu0 0.0
    %1767 = vmatpush1.msra.mxu0 %v1751
    %1768 = vmatprep.subr.mxu0 0.0
    %1769 = vmatpush1.msra.mxu0 %v1752
    %1770 = vmatprep.subr.mxu0 0.0
    %1771 = vmatpush1.msra.mxu0 %v1753
    %1772 = vmatprep.subr.mxu0 0.0
    %1773 = vmatpush1.msra.mxu0 %v1754
    %1774 = vmatprep.subr.mxu0 0.0
    %1775 = vmatpush1.msra.mxu0 0.0
    %1776 = vmatprep.subr.mxu0 0.0
    %1777 = vmatpush1.msra.mxu0 0.0
    %1778 = vmatprep.subr.mxu0 0.0
    %1779 = vmatpush1.msra.mxu0 0.0
    %1780 = vmatprep.subr.mxu0 0.0
    %1781 = vmatpush1.msra.mxu0 0.0
    %1782 = vmatprep.subr.mxu0 0.0
    %1783 = vmatpush1.msra.mxu0 0.0
    %1784 = vmatprep.subr.mxu0 0.0
    %1785 = vmatpush1.msra.mxu0 0.0
    %1786 = vmatprep.subr.mxu0 0.0
    %1787 = vmatpush1.msra.mxu0 0.0
    %1788 = vmatprep.subr.mxu0 0.0
    %1789 = vmatpush1.msra.mxu0 0.0
    %1790 = vmatprep.subr.mxu0 0.0
    %1791 = vmatpush1.msra.mxu0 0.0
    %1792 = vmatprep.subr.mxu0 0.0
    %1793 = vmatpush1.msra.mxu0 0.0
    %1794 = vmatprep.subr.mxu0 0.0
    %1795 = vmatpush1.msra.mxu0 0.0
    %1796 = vmatprep.subr.mxu0 0.0
    %1797 = vmatpush1.msra.mxu0 0.0
    %1798 = vmatprep.subr.mxu0 0.0
    %1799 = vmatpush1.msra.mxu0 0.0
    %1800 = vmatprep.subr.mxu0 0.0
    %1801 = vmatpush1.msra.mxu0 0.0
    %1802 = vmatprep.subr.mxu0 0.0
    %1803 = vmatpush1.msra.mxu0 0.0
    %1804 = vmatprep.subr.mxu0 0.0
    %1805 = vmatpush1.msra.mxu0 0.0
    %1806 = vmatprep.subr.mxu0 0.0
    %1807 = vmatpush1.msra.mxu0 0.0
    %1808 = vmatprep.subr.mxu0 0.0
    %1809 = vmatpush1.msra.mxu0 0.0
    %1810 = vmatprep.subr.mxu0 0.0
    %1811 = vmatpush1.msra.mxu0 0.0
    %1812 = vmatprep.subr.mxu0 0.0
    %1813 = vmatpush1.msra.mxu0 0.0
    %1814 = vmatprep.subr.mxu0 0.0
    %1815 = vmatpush1.msra.mxu0 0.0
    %1816 = vmatprep.subr.mxu0 0.0
    %1817 = vmatpush1.msra.mxu0 0.0
    %1818 = vmatprep.subr.mxu0 0.0
    %1819 = vmatpush1.msra.mxu0 0.0
    %1820 = vmatprep.subr.mxu0 0.0
    %1821 = vmatpush1.msra.mxu0 0.0
    %1822 = vmatprep.subr.mxu0 0.0
    %1823 = vmatpush1.msra.mxu0 0.0
    %1824 = vmatprep.subr.mxu0 0.0
    %1825 = vmatpush1.msra.mxu0 0.0
    %1826 = vmatprep.subr.mxu0 0.0
    %1827 = vmatpush1.msra.mxu0 0.0
    %1828 = vmatprep.subr.mxu0 0.0
    %1829 = vmatpush1.msra.mxu0 0.0
    %1830 = vmatprep.mubr.f32.mxu0 0.0
    %1831 = vmatmul.mubr.f32.gmra.mrb[0].mxu0 %v1764
    %v1832 = vpop.f32.mrb[0].mxu0
    %v1833 = vadd.f32 %v1759, %v1832
    %v1834 = vpop.f32.mrb[0].mxu0
    %1835 = vdwg.mxu0
    %v1838 = vunpack.c.l.s4 1966171168
    %v1839 = vunpack.c.0.s8 %v1838
    %v1840 = vlaneseq
    %v1841 = vshrl.u32 %v1840, 7
    %v1842 = vsub.s32 %v1839, %v1841
    %v1843 = vrot.slane %v1833, %v1842
    %v1844 = vcombine.high %v1843, %v1843
    %v1846 = vunpack.c.l.s4 1966171168
    %v1847 = vunpack.c.0.s8 %v1846
    %v1848 = vlaneseq
    %v1849 = vshrl.u32 %v1848, 7
    %v1850 = vsub.s32 %v1847, %v1849
    %v1851 = vrot.slane %v1843, %v1850
    %v1853 = vunpack.c.l.s4 1966171168
    %v1854 = vunpack.c.0.s8 %v1853
    %v1855 = vlaneseq
    %v1856 = vshrl.u32 %v1855, 7
    %v1857 = vsub.s32 %v1854, %v1856
    %v1858 = vrot.slane %v1844, %v1857
    %1861 = vst [vmem:[#allocation11] sm:$0x1] %v1851
    %1862 = vst [vmem:[#allocation11 + $0x1] sm:$0x1] %v1858
    // Predicated region
    $region50: #{tpu_custom_call.1} parent=1 // pred_check
      _
    $region51: #{tpu_custom_call.1} parent=1 // pred_check_branch
      %1864 = sbr.rel (0) target = $region53
    $region52: #{tpu_custom_call.1} parent=1 // pred_region
      %s1866 = ssub.s32 32, 32
      %1867 = vsyncadd [#allocation4], %s1866
      %s1868 = sshll.u32 [#allocation11], 4
      %s1869 = int_to_ptr.vmem [resolvable:$true] %s1868
      %1874 = dma.vmem_to_hbm [thread:$0]  %s1869, 32, %s7, [#allocation4], 16, 16, 1
    $region53: #{tpu_custom_call.1} parent=1 // pred_fallthru
      _
    // Predicated region
    $region54: #{tpu_custom_call.1} parent=1 // pred_check
      _
    $region55: #{tpu_custom_call.1} parent=1 // pred_check_branch
      %1876 = sbr.rel (0) target = $region57
    $region56: #{tpu_custom_call.1} parent=1 // pred_region
      %1877 = dma.done [#allocation4], 32
    $region57: #{tpu_custom_call.1} parent=1 // pred_fallthru
      _
    %1878 = vsyncpa [#allocation3], 1
    %1879 = vsyncpa [#allocation6], 1
    %1880 = vsyncpa [#allocation9], 1
    %1881 = vsyncpa [#allocation4], 1

</llo_original>
